<compile_context>
chip_gen: v7x
topology: tpu7x:2x2x1
jax: 0.10.0
libtpu: 0.0.40
codegen_flags: <defaults>
</compile_context>

<pallas_src>
import functools

import jax
import jax.numpy as jnp
from jax.experimental import pallas as pl
from jax.experimental.pallas import tpu as pltpu

# ----------------------------- config (small) -------------------------------
B = 2          # batch
S = 8          # sequence length
H = 32         # hidden size      (bert-base: 768)
NH = 2         # attention heads  (bert-base: 12)
DH = H // NH   # head dim
L = 4          # encoder layers   (bert-base: 12) -> hidden_states has L+1 entries
FF = 4 * H     # ffn intermediate
V = 50         # vocab size
S_MAX = 16     # max position embeddings
LN_EPS = 1e-12
LEAKY_SLOPE = 0.01   # nn.LeakyReLU() default
OUT_PAD = 128        # lane-dense padded QA-head output width


# --------------------------- in-kernel helpers -------------------------------
def _ln(x, g, b):
    # biased-variance LayerNorm in f32 (matches PyTorch/HF semantics)
    mu = jnp.mean(x, axis=-1, keepdims=True)
    var = jnp.mean(jnp.square(x - mu), axis=-1, keepdims=True)
    return (x - mu) * jax.lax.rsqrt(var + LN_EPS) * g + b


def _gelu(x):
    # TODO(synk): exact erf-GELU approximated with the tanh form inside the
    # fused kernel (tanh lowers to the EUP on all TPU generations).
    return 0.5 * x * (1.0 + jnp.tanh(0.7978845608028654 * (x + 0.044715 * x * x * x)))


# --------------------------- fused encoder layer -----------------------------
def _encoder_layer_kernel(x_ref, mb_ref,
                          wqkv_ref, bqkv_ref, wo_ref, bo_ref,
                          ln1g_ref, ln1b_ref,
                          wi_ref, bi_ref, wf_ref, bf_ref,
                          ln2g_ref, ln2b_ref,
                          o_ref):
    x = x_ref[...]                                            # (S, H) f32
    seq, hid = x.shape
    bias = mb_ref[...]                                        # (1, S) additive mask

    # Fused QKV projection: one MXU pass over a 3H-wide output.
    qkv = (jnp.dot(x, wqkv_ref[...], preferred_element_type=jnp.float32)
           + bqkv_ref[...])                                   # (S, 3H)
    scale = 1.0 / jnp.sqrt(jnp.float32(DH))

    # Per-head attention; output projection folded per head so no concat is
    # needed:  ctx @ Wo == sum_h ctx_h @ Wo[h*DH:(h+1)*DH, :]
    attn_out = jnp.zeros((seq, hid), jnp.float32)
    for h in range(NH):                                       # static unroll
        qh = qkv[:, h * DH:(h + 1) * DH]                      # (S, DH)
        kh = qkv[:, H + h * DH:H + (h + 1) * DH]
        vh = qkv[:, 2 * H + h * DH:2 * H + (h + 1) * DH]
        s = (jnp.dot(qh, kh.T, preferred_element_type=jnp.float32) * scale
             + bias)                                          # (S, S)
        s = s - jnp.max(s, axis=-1, keepdims=True)
        p = jnp.exp(s)
        p = p / jnp.sum(p, axis=-1, keepdims=True)
        ctx_h = jnp.dot(p, vh, preferred_element_type=jnp.float32)      # (S, DH)
        attn_out = attn_out + jnp.dot(ctx_h, wo_ref[h * DH:(h + 1) * DH, :],
                                      preferred_element_type=jnp.float32)
    attn_out = attn_out + bo_ref[...]

    x = _ln(x + attn_out, ln1g_ref[...], ln1b_ref[...])

    # FFN: intermediate stays in VMEM/vregs (never touches HBM).
    hmid = jnp.dot(x, wi_ref[...], preferred_element_type=jnp.float32) + bi_ref[...]
    hmid = _gelu(hmid)
    ffn = jnp.dot(hmid, wf_ref[...], preferred_element_type=jnp.float32) + bf_ref[...]

    o_ref[...] = _ln(x + ffn, ln2g_ref[...], ln2b_ref[...])


def _resident(shape):
    # whole-array weight block that stays VMEM-resident across the batch grid
    return pl.BlockSpec(shape, lambda b: (0,) * len(shape))


def encoder_layer(p, x, mask_bias):
    """x: (B, S, H); mask_bias: (B, 1, S) additive -10000 mask. One fused kernel."""
    return pl.pallas_call(
        _encoder_layer_kernel,
        out_shape=jax.ShapeDtypeStruct((B, S, H), jnp.float32),
        grid=(B,),
        in_specs=[
            pl.BlockSpec((None, S, H), lambda b: (b, 0, 0)),   # x  (per-batch tile)
            pl.BlockSpec((None, 1, S), lambda b: (b, 0, 0)),   # mask bias
            _resident((H, 3 * H)), _resident((1, 3 * H)),      # fused QKV
            _resident((H, H)),     _resident((1, H)),          # attn out proj
            _resident((1, H)),     _resident((1, H)),          # LN1
            _resident((H, FF)),    _resident((1, FF)),         # FFN in
            _resident((FF, H)),    _resident((1, H)),          # FFN out
            _resident((1, H)),     _resident((1, H)),          # LN2
        ],
        out_specs=pl.BlockSpec((None, S, H), lambda b: (b, 0, 0)),
        compiler_params=pltpu.CompilerParams(
            dimension_semantics=("parallel",)),                # 2 TCs on v7x
    )(x, mask_bias,
      p["w_qkv"], p["b_qkv"], p["wo"], p["bo"],
      p["ln1_g"], p["ln1_b"], p["wi"], p["bi"], p["wf"], p["bf"],
      p["ln2_g"], p["ln2_b"])


# --------------------------- fused QA head -----------------------------------
def _qa_head_kernel(hl_ref, hm_ref, w1a_ref, w1b_ref, b1_ref, w2_ref, b2_ref, o_ref):
    # cat(last, -3) @ W1  ==  last @ W1[:H] + (-3) @ W1[H:]   (concat-free)
    h = (jnp.dot(hl_ref[...], w1a_ref[...], preferred_element_type=jnp.float32)
         + jnp.dot(hm_ref[...], w1b_ref[...], preferred_element_type=jnp.float32)
         + b1_ref[...])
    h = jnp.where(h > 0, h, LEAKY_SLOPE * h)                  # LeakyReLU(0.01)
    # lane-dense 128-wide output (W2 zero-padded); unmasked vector stores.
    o_ref[...] = (jnp.dot(h, w2_ref[...], preferred_element_type=jnp.float32)
                  + b2_ref[...])


def qa_head(h_last, h_m3, w1, b1, w2, b2):
    """h_last/h_m3: (N, H) -> logits (N, 2). Dropout(0.1) is identity at eval."""
    n = h_last.shape[0]
    h2 = 2 * H
    tm = n                      # single row tile at this size (use ~512 at bert-base)
    assert n % tm == 0 and tm % 8 == 0
    w1a = w1[:H, :]
    w1b = w1[H:, :]
    w2p = jnp.zeros((h2, OUT_PAD), jnp.float32).at[:, :2].set(w2)
    b2p = jnp.zeros((1, OUT_PAD), jnp.float32).at[0, :2].set(b2)
    logits_pad = pl.pallas_call(
        _qa_head_kernel,
        out_shape=jax.ShapeDtypeStruct((n, OUT_PAD), jnp.float32),
        grid=(n // tm,),
        in_specs=[
            pl.BlockSpec((tm, H), lambda i: (i, 0)),
            pl.BlockSpec((tm, H), lambda i: (i, 0)),
            pl.BlockSpec((H, h2), lambda i: (0, 0)),
            pl.BlockSpec((H, h2), lambda i: (0, 0)),
            pl.BlockSpec((1, h2), lambda i: (0, 0)),
            pl.BlockSpec((h2, OUT_PAD), lambda i: (0, 0)),
            pl.BlockSpec((1, OUT_PAD), lambda i: (0, 0)),
        ],
        out_specs=pl.BlockSpec((tm, OUT_PAD), lambda i: (i, 0)),
        compiler_params=pltpu.CompilerParams(dimension_semantics=("parallel",)),
    )(h_last, h_m3, w1a, w1b, b1.reshape(1, h2), w2p, b2p)
    return logits_pad[:, :2]


# --------------------------- mini-BERT glue ----------------------------------
def _layer_norm_host(x, g, b):
    mu = jnp.mean(x, axis=-1, keepdims=True)
    var = jnp.mean((x - mu) ** 2, axis=-1, keepdims=True)
    return (x - mu) * jax.lax.rsqrt(var + LN_EPS) * g + b


def bert_forward(params, input_ids, attention_mask, token_type_ids):
    # TODO(synk): embedding gather + embedding LayerNorm kept in plain XLA
    # (data-dependent gather has no clean tiled BlockSpec at this size).
    emb = (params["word_emb"][input_ids]
           + params["pos_emb"][:S][None, :, :]
           + params["type_emb"][token_type_ids])
    x = _layer_norm_host(emb, params["emb_ln_g"], params["emb_ln_b"])
    hidden_states = [x]                       # like HF output_hidden_states=True
    mask_bias = ((1.0 - attention_mask.astype(jnp.float32)) * -10000.0)[:, None, :]
    for lp in params["layers"]:
        x = encoder_layer(lp, x, mask_bias)   # one fused pallas_call per layer
        hidden_states.append(x)
    return hidden_states


def qa_lang_model_forward(params, input_ids, attention_mask, token_type_ids):
    hidden_states = bert_forward(params, input_ids, attention_mask, token_type_ids)
    h_last = hidden_states[-1].reshape(B * S, H)
    h_m3 = hidden_states[-3].reshape(B * S, H)
    # TODO(synk): nn.Dropout(0.1) is identity at inference; training-mode RNG
    # dropout not emitted.
    logits = qa_head(h_last, h_m3, params["w1"], params["b1"],
                     params["w2"], params["b2"]).reshape(B, S, 2)
    start_logits = logits[..., 0]             # split(1, dim=-1) + squeeze(-1)
    end_logits = logits[..., 1]
    return start_logits, end_logits


# --------------------------- deterministic params ----------------------------
def init_params(key):
    def nrm(k, shape, scale=0.02):
        return scale * jax.random.normal(k, shape, dtype=jnp.float32)

    keys = iter(jax.random.split(key, 256))
    params = {
        "word_emb": nrm(next(keys), (V, H)),
        "pos_emb": nrm(next(keys), (S_MAX, H)),
        "type_emb": nrm(next(keys), (2, H)),
        "emb_ln_g": jnp.ones((H,), jnp.float32),
        "emb_ln_b": jnp.zeros((H,), jnp.float32),
        "layers": [],
    }
    for _ in range(L):
        params["layers"].append({
            # Q/K/V fused into a single (H, 3H) weight for one MXU pass.
            "w_qkv": nrm(next(keys), (H, 3 * H)),
            "b_qkv": jnp.zeros((1, 3 * H), jnp.float32),
            "wo": nrm(next(keys), (H, H)), "bo": jnp.zeros((1, H), jnp.float32),
            "ln1_g": jnp.ones((1, H), jnp.float32),
            "ln1_b": jnp.zeros((1, H), jnp.float32),
            "wi": nrm(next(keys), (H, FF)), "bi": jnp.zeros((1, FF), jnp.float32),
            "wf": nrm(next(keys), (FF, H)), "bf": jnp.zeros((1, H), jnp.float32),
            "ln2_g": jnp.ones((1, H), jnp.float32),
            "ln2_b": jnp.zeros((1, H), jnp.float32),
        })
    # QA head: Linear(2H, 2H) and Linear(2H, 2), stored as (in, out)
    params["w1"] = nrm(next(keys), (2 * H, 2 * H))
    params["b1"] = jnp.zeros((2 * H,), jnp.float32)
    params["w2"] = nrm(next(keys), (2 * H, 2))
    params["b2"] = jnp.zeros((2,), jnp.float32)
    return params


# ----------------------------------- main ------------------------------------
if __name__ == "__main__":
    root = jax.random.PRNGKey(0)
    k_param, k_ids = jax.random.split(root)

    params = init_params(k_param)

    input_ids = jax.random.randint(k_ids, (B, S), 0, V, dtype=jnp.int32)
    attention_mask = jnp.ones((B, S), dtype=jnp.int32)
    attention_mask = attention_mask.at[1, S - 2:].set(0)          # some padding
    token_type_ids = jnp.concatenate(
        [jnp.zeros((B, S // 2), jnp.int32), jnp.ones((B, S // 2), jnp.int32)], axis=-1)

    fwd = jax.jit(functools.partial(qa_lang_model_forward, params))
    start_logits, end_logits = fwd(input_ids, attention_mask, token_type_ids)
    jax.block_until_ready((start_logits, end_logits))

    assert start_logits.shape == (B, S) and end_logits.shape == (B, S)
    assert start_logits.dtype == jnp.float32 and end_logits.dtype == jnp.float32
    print("KERNEL_OK")
</pallas_src>

<mosaic_0001>
module attributes {stable_mosaic.version = 11 : i64} {
  func.func @_encoder_layer_kernel(%arg0: i32, %arg1: memref<1x8x32xf32, #tpu.memory_space<vmem>>, %arg2: memref<1x1x8xf32, #tpu.memory_space<vmem>>, %arg3: memref<32x96xf32, #tpu.memory_space<vmem>>, %arg4: memref<1x96xf32, #tpu.memory_space<vmem>>, %arg5: memref<32x32xf32, #tpu.memory_space<vmem>>, %arg6: memref<1x32xf32, #tpu.memory_space<vmem>>, %arg7: memref<1x32xf32, #tpu.memory_space<vmem>>, %arg8: memref<1x32xf32, #tpu.memory_space<vmem>>, %arg9: memref<32x128xf32, #tpu.memory_space<vmem>>, %arg10: memref<1x128xf32, #tpu.memory_space<vmem>>, %arg11: memref<128x32xf32, #tpu.memory_space<vmem>>, %arg12: memref<1x32xf32, #tpu.memory_space<vmem>>, %arg13: memref<1x32xf32, #tpu.memory_space<vmem>>, %arg14: memref<1x32xf32, #tpu.memory_space<vmem>>, %arg15: memref<1x8x32xf32, #tpu.memory_space<vmem>>) attributes {dimension_semantics = [#tpu.dimension_semantics<parallel>], iteration_bounds = array<i64: 2>, scalar_prefetch = 0 : i64, scratch_operands = 0 : i64, tpu.core_type = #tpu.core_type<tc>, window_params = [{transform_indices = @transform_0, window_bounds = array<i64: 1, 8, 32>}, {transform_indices = @transform_1, window_bounds = array<i64: 1, 1, 8>}, {pipeline_mode = #tpu.pipeline_mode<synchronous>, transform_indices = @transform_2, window_bounds = array<i64: 32, 96>}, {pipeline_mode = #tpu.pipeline_mode<synchronous>, transform_indices = @transform_3, window_bounds = array<i64: 1, 96>}, {pipeline_mode = #tpu.pipeline_mode<synchronous>, transform_indices = @transform_4, window_bounds = array<i64: 32, 32>}, {pipeline_mode = #tpu.pipeline_mode<synchronous>, transform_indices = @transform_5, window_bounds = array<i64: 1, 32>}, {pipeline_mode = #tpu.pipeline_mode<synchronous>, transform_indices = @transform_6, window_bounds = array<i64: 1, 32>}, {pipeline_mode = #tpu.pipeline_mode<synchronous>, transform_indices = @transform_7, window_bounds = array<i64: 1, 32>}, {pipeline_mode = #tpu.pipeline_mode<synchronous>, transform_indices = @transform_8, window_bounds = array<i64: 32, 128>}, {pipeline_mode = #tpu.pipeline_mode<synchronous>, transform_indices = @transform_9, window_bounds = array<i64: 1, 128>}, {pipeline_mode = #tpu.pipeline_mode<synchronous>, transform_indices = @transform_10, window_bounds = array<i64: 128, 32>}, {pipeline_mode = #tpu.pipeline_mode<synchronous>, transform_indices = @transform_11, window_bounds = array<i64: 1, 32>}, {pipeline_mode = #tpu.pipeline_mode<synchronous>, transform_indices = @transform_12, window_bounds = array<i64: 1, 32>}, {pipeline_mode = #tpu.pipeline_mode<synchronous>, transform_indices = @transform_13, window_bounds = array<i64: 1, 32>}, {transform_indices = @transform_14, window_bounds = array<i64: 1, 8, 32>}]} {
    %c0 = arith.constant 0 : index
    %c0_0 = arith.constant 0 : index
    %c0_1 = arith.constant 0 : index
    %0 = vector.load %arg1[%c0, %c0_0, %c0_1] : memref<1x8x32xf32, #tpu.memory_space<vmem>>, vector<1x8x32xf32>
    %1 = vector.shape_cast %0 : vector<1x8x32xf32> to vector<8x32xf32>
    %c0_2 = arith.constant 0 : index
    %c0_3 = arith.constant 0 : index
    %c0_4 = arith.constant 0 : index
    %2 = vector.load %arg2[%c0_2, %c0_3, %c0_4] : memref<1x1x8xf32, #tpu.memory_space<vmem>>, vector<1x1x8xf32>
    %3 = vector.shape_cast %2 : vector<1x1x8xf32> to vector<1x8xf32>
    %c0_5 = arith.constant 0 : index
    %c0_6 = arith.constant 0 : index
    %4 = vector.load %arg3[%c0_5, %c0_6] : memref<32x96xf32, #tpu.memory_space<vmem>>, vector<32x96xf32>
    %cst = arith.constant dense<0.000000e+00> : vector<8x96xf32>
    %5 = tpu.matmul %1, %4, %cst {dimension_numbers = #tpu.dot_dimension_numbers<[1], [0], [0], [1], [0, 0, 1, 1], [], []>} : vector<8x32xf32>, vector<32x96xf32>, vector<8x96xf32> -> vector<8x96xf32>
    %c0_7 = arith.constant 0 : index
    %c0_8 = arith.constant 0 : index
    %6 = vector.load %arg4[%c0_7, %c0_8] : memref<1x96xf32, #tpu.memory_space<vmem>>, vector<1x96xf32>
    %7 = vector.broadcast %6 : vector<1x96xf32> to vector<8x96xf32>
    %8 = arith.addf %5, %7 : vector<8x96xf32>
    %cst_9 = arith.constant 1.600000e+01 : f32
    %9 = math.sqrt %cst_9 : f32
    %cst_10 = arith.constant 1.000000e+00 : f32
    %10 = arith.divf %cst_10, %9 : f32
    %cst_11 = arith.constant 0.000000e+00 : f32
    %11 = vector.broadcast %cst_11 : f32 to vector<8x32xf32>
    %12 = vector.extract_strided_slice %8 {offsets = [0, 0], sizes = [8, 16], strides = [1, 1]} : vector<8x96xf32> to vector<8x16xf32>
    %13 = vector.extract_strided_slice %8 {offsets = [0, 32], sizes = [8, 16], strides = [1, 1]} : vector<8x96xf32> to vector<8x16xf32>
    %14 = vector.extract_strided_slice %8 {offsets = [0, 64], sizes = [8, 16], strides = [1, 1]} : vector<8x96xf32> to vector<8x16xf32>
    %15 = tpu.transpose %13, [1, 0] : vector<8x16xf32> -> vector<16x8xf32>
    %cst_12 = arith.constant dense<0.000000e+00> : vector<8x8xf32>
    %16 = tpu.matmul %12, %15, %cst_12 {dimension_numbers = #tpu.dot_dimension_numbers<[1], [0], [0], [1], [0, 0, 1, 1], [], []>} : vector<8x16xf32>, vector<16x8xf32>, vector<8x8xf32> -> vector<8x8xf32>
    %17 = vector.broadcast %10 : f32 to vector<8x8xf32>
    %18 = arith.mulf %16, %17 : vector<8x8xf32>
    %19 = vector.broadcast %3 : vector<1x8xf32> to vector<8x8xf32>
    %20 = arith.addf %18, %19 : vector<8x8xf32>
    %cst_13 = arith.constant dense<0xFF800000> : vector<8xf32>
    %21 = vector.multi_reduction <maximumf>, %20, %cst_13 [1] : vector<8x8xf32> to vector<8xf32>
    %22 = vector.shape_cast %21 : vector<8xf32> to vector<8x1xf32>
    %23 = vector.broadcast %22 : vector<8x1xf32> to vector<8x8xf32>
    %24 = arith.subf %20, %23 : vector<8x8xf32>
    %25 = math.exp %24 : vector<8x8xf32>
    %cst_14 = arith.constant dense<0.000000e+00> : vector<8xf32>
    %26 = vector.multi_reduction <add>, %25, %cst_14 [1] : vector<8x8xf32> to vector<8xf32>
    %27 = vector.shape_cast %26 : vector<8xf32> to vector<8x1xf32>
    %28 = vector.broadcast %27 : vector<8x1xf32> to vector<8x8xf32>
    %29 = arith.divf %25, %28 : vector<8x8xf32>
    %cst_15 = arith.constant dense<0.000000e+00> : vector<8x16xf32>
    %30 = tpu.matmul %29, %14, %cst_15 {dimension_numbers = #tpu.dot_dimension_numbers<[1], [0], [0], [1], [0, 0, 1, 1], [], []>} : vector<8x8xf32>, vector<8x16xf32>, vector<8x16xf32> -> vector<8x16xf32>
    %c0_16 = arith.constant 0 : index
    %c0_17 = arith.constant 0 : index
    %31 = vector.load %arg5[%c0_16, %c0_17] : memref<32x32xf32, #tpu.memory_space<vmem>>, vector<16x32xf32>
    %cst_18 = arith.constant dense<0.000000e+00> : vector<8x32xf32>
    %32 = tpu.matmul %30, %31, %cst_18 {dimension_numbers = #tpu.dot_dimension_numbers<[1], [0], [0], [1], [0, 0, 1, 1], [], []>} : vector<8x16xf32>, vector<16x32xf32>, vector<8x32xf32> -> vector<8x32xf32>
    %33 = arith.addf %11, %32 : vector<8x32xf32>
    %34 = vector.extract_strided_slice %8 {offsets = [0, 16], sizes = [8, 16], strides = [1, 1]} : vector<8x96xf32> to vector<8x16xf32>
    %35 = vector.extract_strided_slice %8 {offsets = [0, 48], sizes = [8, 16], strides = [1, 1]} : vector<8x96xf32> to vector<8x16xf32>
    %36 = vector.extract_strided_slice %8 {offsets = [0, 80], sizes = [8, 16], strides = [1, 1]} : vector<8x96xf32> to vector<8x16xf32>
    %37 = tpu.transpose %35, [1, 0] : vector<8x16xf32> -> vector<16x8xf32>
    %cst_19 = arith.constant dense<0.000000e+00> : vector<8x8xf32>
    %38 = tpu.matmul %34, %37, %cst_19 {dimension_numbers = #tpu.dot_dimension_numbers<[1], [0], [0], [1], [0, 0, 1, 1], [], []>} : vector<8x16xf32>, vector<16x8xf32>, vector<8x8xf32> -> vector<8x8xf32>
    %39 = vector.broadcast %10 : f32 to vector<8x8xf32>
    %40 = arith.mulf %38, %39 : vector<8x8xf32>
    %41 = vector.broadcast %3 : vector<1x8xf32> to vector<8x8xf32>
    %42 = arith.addf %40, %41 : vector<8x8xf32>
    %cst_20 = arith.constant dense<0xFF800000> : vector<8xf32>
    %43 = vector.multi_reduction <maximumf>, %42, %cst_20 [1] : vector<8x8xf32> to vector<8xf32>
    %44 = vector.shape_cast %43 : vector<8xf32> to vector<8x1xf32>
    %45 = vector.broadcast %44 : vector<8x1xf32> to vector<8x8xf32>
    %46 = arith.subf %42, %45 : vector<8x8xf32>
    %47 = math.exp %46 : vector<8x8xf32>
    %cst_21 = arith.constant dense<0.000000e+00> : vector<8xf32>
    %48 = vector.multi_reduction <add>, %47, %cst_21 [1] : vector<8x8xf32> to vector<8xf32>
    %49 = vector.shape_cast %48 : vector<8xf32> to vector<8x1xf32>
    %50 = vector.broadcast %49 : vector<8x1xf32> to vector<8x8xf32>
    %51 = arith.divf %47, %50 : vector<8x8xf32>
    %cst_22 = arith.constant dense<0.000000e+00> : vector<8x16xf32>
    %52 = tpu.matmul %51, %36, %cst_22 {dimension_numbers = #tpu.dot_dimension_numbers<[1], [0], [0], [1], [0, 0, 1, 1], [], []>} : vector<8x8xf32>, vector<8x16xf32>, vector<8x16xf32> -> vector<8x16xf32>
    %c16 = arith.constant 16 : index
    %c0_23 = arith.constant 0 : index
    %53 = vector.load %arg5[%c16, %c0_23] : memref<32x32xf32, #tpu.memory_space<vmem>>, vector<16x32xf32>
    %cst_24 = arith.constant dense<0.000000e+00> : vector<8x32xf32>
    %54 = tpu.matmul %52, %53, %cst_24 {dimension_numbers = #tpu.dot_dimension_numbers<[1], [0], [0], [1], [0, 0, 1, 1], [], []>} : vector<8x16xf32>, vector<16x32xf32>, vector<8x32xf32> -> vector<8x32xf32>
    %55 = arith.addf %33, %54 : vector<8x32xf32>
    %c0_25 = arith.constant 0 : index
    %c0_26 = arith.constant 0 : index
    %56 = vector.load %arg6[%c0_25, %c0_26] : memref<1x32xf32, #tpu.memory_space<vmem>>, vector<1x32xf32>
    %57 = vector.broadcast %56 : vector<1x32xf32> to vector<8x32xf32>
    %58 = arith.addf %55, %57 : vector<8x32xf32>
    %59 = arith.addf %1, %58 : vector<8x32xf32>
    %c0_27 = arith.constant 0 : index
    %c0_28 = arith.constant 0 : index
    %60 = vector.load %arg7[%c0_27, %c0_28] : memref<1x32xf32, #tpu.memory_space<vmem>>, vector<1x32xf32>
    %c0_29 = arith.constant 0 : index
    %c0_30 = arith.constant 0 : index
    %61 = vector.load %arg8[%c0_29, %c0_30] : memref<1x32xf32, #tpu.memory_space<vmem>>, vector<1x32xf32>
    %cst_31 = arith.constant dense<0.000000e+00> : vector<8xf32>
    %62 = vector.multi_reduction <add>, %59, %cst_31 [1] : vector<8x32xf32> to vector<8xf32>
    %63 = vector.shape_cast %62 : vector<8xf32> to vector<8x1xf32>
    %cst_32 = arith.constant 3.200000e+01 : f32
    %64 = vector.broadcast %cst_32 : f32 to vector<8x1xf32>
    %65 = arith.divf %63, %64 : vector<8x1xf32>
    %66 = vector.broadcast %65 : vector<8x1xf32> to vector<8x32xf32>
    %67 = arith.subf %59, %66 : vector<8x32xf32>
    %68 = arith.mulf %67, %67 : vector<8x32xf32>
    %cst_33 = arith.constant dense<0.000000e+00> : vector<8xf32>
    %69 = vector.multi_reduction <add>, %68, %cst_33 [1] : vector<8x32xf32> to vector<8xf32>
    %70 = vector.shape_cast %69 : vector<8xf32> to vector<8x1xf32>
    %cst_34 = arith.constant 3.200000e+01 : f32
    %71 = vector.broadcast %cst_34 : f32 to vector<8x1xf32>
    %72 = arith.divf %70, %71 : vector<8x1xf32>
    %73 = vector.broadcast %65 : vector<8x1xf32> to vector<8x32xf32>
    %74 = arith.subf %59, %73 : vector<8x32xf32>
    %cst_35 = arith.constant 9.99999996E-13 : f32
    %75 = vector.broadcast %cst_35 : f32 to vector<8x1xf32>
    %76 = arith.addf %72, %75 : vector<8x1xf32>
    %77 = math.rsqrt %76 : vector<8x1xf32>
    %78 = vector.broadcast %77 : vector<8x1xf32> to vector<8x32xf32>
    %79 = arith.mulf %74, %78 : vector<8x32xf32>
    %80 = vector.broadcast %60 : vector<1x32xf32> to vector<8x32xf32>
    %81 = arith.mulf %79, %80 : vector<8x32xf32>
    %82 = vector.broadcast %61 : vector<1x32xf32> to vector<8x32xf32>
    %83 = arith.addf %81, %82 : vector<8x32xf32>
    %c0_36 = arith.constant 0 : index
    %c0_37 = arith.constant 0 : index
    %84 = vector.load %arg9[%c0_36, %c0_37] : memref<32x128xf32, #tpu.memory_space<vmem>>, vector<32x128xf32>
    %cst_38 = arith.constant dense<0.000000e+00> : vector<8x128xf32>
    %85 = tpu.matmul %83, %84, %cst_38 {dimension_numbers = #tpu.dot_dimension_numbers<[1], [0], [0], [1], [0, 0, 1, 1], [], []>} : vector<8x32xf32>, vector<32x128xf32>, vector<8x128xf32> -> vector<8x128xf32>
    %c0_39 = arith.constant 0 : index
    %c0_40 = arith.constant 0 : index
    %86 = vector.load %arg10[%c0_39, %c0_40] : memref<1x128xf32, #tpu.memory_space<vmem>>, vector<1x128xf32>
    %87 = vector.broadcast %86 : vector<1x128xf32> to vector<8x128xf32>
    %88 = arith.addf %85, %87 : vector<8x128xf32>
    %cst_41 = arith.constant 5.000000e-01 : f32
    %89 = vector.broadcast %cst_41 : f32 to vector<8x128xf32>
    %90 = arith.mulf %89, %88 : vector<8x128xf32>
    %cst_42 = arith.constant 4.471500e-02 : f32
    %91 = vector.broadcast %cst_42 : f32 to vector<8x128xf32>
    %92 = arith.mulf %91, %88 : vector<8x128xf32>
    %93 = arith.mulf %92, %88 : vector<8x128xf32>
    %94 = arith.mulf %93, %88 : vector<8x128xf32>
    %95 = arith.addf %88, %94 : vector<8x128xf32>
    %cst_43 = arith.constant 0.797884583 : f32
    %96 = vector.broadcast %cst_43 : f32 to vector<8x128xf32>
    %97 = arith.mulf %96, %95 : vector<8x128xf32>
    %98 = math.tanh %97 : vector<8x128xf32>
    %cst_44 = arith.constant 1.000000e+00 : f32
    %99 = vector.broadcast %cst_44 : f32 to vector<8x128xf32>
    %100 = arith.addf %99, %98 : vector<8x128xf32>
    %101 = arith.mulf %90, %100 : vector<8x128xf32>
    %c0_45 = arith.constant 0 : index
    %c0_46 = arith.constant 0 : index
    %102 = vector.load %arg11[%c0_45, %c0_46] : memref<128x32xf32, #tpu.memory_space<vmem>>, vector<128x32xf32>
    %cst_47 = arith.constant dense<0.000000e+00> : vector<8x32xf32>
    %103 = tpu.matmul %101, %102, %cst_47 {dimension_numbers = #tpu.dot_dimension_numbers<[1], [0], [0], [1], [0, 0, 1, 1], [], []>} : vector<8x128xf32>, vector<128x32xf32>, vector<8x32xf32> -> vector<8x32xf32>
    %c0_48 = arith.constant 0 : index
    %c0_49 = arith.constant 0 : index
    %104 = vector.load %arg12[%c0_48, %c0_49] : memref<1x32xf32, #tpu.memory_space<vmem>>, vector<1x32xf32>
    %105 = vector.broadcast %104 : vector<1x32xf32> to vector<8x32xf32>
    %106 = arith.addf %103, %105 : vector<8x32xf32>
    %107 = arith.addf %83, %106 : vector<8x32xf32>
    %c0_50 = arith.constant 0 : index
    %c0_51 = arith.constant 0 : index
    %108 = vector.load %arg13[%c0_50, %c0_51] : memref<1x32xf32, #tpu.memory_space<vmem>>, vector<1x32xf32>
    %c0_52 = arith.constant 0 : index
    %c0_53 = arith.constant 0 : index
    %109 = vector.load %arg14[%c0_52, %c0_53] : memref<1x32xf32, #tpu.memory_space<vmem>>, vector<1x32xf32>
    %cst_54 = arith.constant dense<0.000000e+00> : vector<8xf32>
    %110 = vector.multi_reduction <add>, %107, %cst_54 [1] : vector<8x32xf32> to vector<8xf32>
    %111 = vector.shape_cast %110 : vector<8xf32> to vector<8x1xf32>
    %cst_55 = arith.constant 3.200000e+01 : f32
    %112 = vector.broadcast %cst_55 : f32 to vector<8x1xf32>
    %113 = arith.divf %111, %112 : vector<8x1xf32>
    %114 = vector.broadcast %113 : vector<8x1xf32> to vector<8x32xf32>
    %115 = arith.subf %107, %114 : vector<8x32xf32>
    %116 = arith.mulf %115, %115 : vector<8x32xf32>
    %cst_56 = arith.constant dense<0.000000e+00> : vector<8xf32>
    %117 = vector.multi_reduction <add>, %116, %cst_56 [1] : vector<8x32xf32> to vector<8xf32>
    %118 = vector.shape_cast %117 : vector<8xf32> to vector<8x1xf32>
    %cst_57 = arith.constant 3.200000e+01 : f32
    %119 = vector.broadcast %cst_57 : f32 to vector<8x1xf32>
    %120 = arith.divf %118, %119 : vector<8x1xf32>
    %121 = vector.broadcast %113 : vector<8x1xf32> to vector<8x32xf32>
    %122 = arith.subf %107, %121 : vector<8x32xf32>
    %cst_58 = arith.constant 9.99999996E-13 : f32
    %123 = vector.broadcast %cst_58 : f32 to vector<8x1xf32>
    %124 = arith.addf %120, %123 : vector<8x1xf32>
    %125 = math.rsqrt %124 : vector<8x1xf32>
    %126 = vector.broadcast %125 : vector<8x1xf32> to vector<8x32xf32>
    %127 = arith.mulf %122, %126 : vector<8x32xf32>
    %128 = vector.broadcast %108 : vector<1x32xf32> to vector<8x32xf32>
    %129 = arith.mulf %127, %128 : vector<8x32xf32>
    %130 = vector.broadcast %109 : vector<1x32xf32> to vector<8x32xf32>
    %131 = arith.addf %129, %130 : vector<8x32xf32>
    %c0_59 = arith.constant 0 : index
    %c0_60 = arith.constant 0 : index
    %c0_61 = arith.constant 0 : index
    %132 = vector.load %arg15[%c0_59, %c0_60, %c0_61] : memref<1x8x32xf32, #tpu.memory_space<vmem>>, vector<1x8x32xf32>
    %133 = vector.shape_cast %132 : vector<1x8x32xf32> to vector<8x32xf32>
    %134 = vector.shape_cast %131 : vector<8x32xf32> to vector<1x8x32xf32>
    tpu.vector_store %arg15[%c0_59, %c0_60, %c0_61], %134 {strides = array<i32>} : memref<1x8x32xf32, #tpu.memory_space<vmem>>, vector<1x8x32xf32>,
    return
  }
  func.func @transform_0(%arg0: i32) -> (i32, i32, i32) {
    %c0_i32 = arith.constant 0 : i32
    %c0_i32_0 = arith.constant 0 : i32
    %c0_i32_1 = arith.constant 0 : i32
    return %arg0, %c0_i32, %c0_i32_0 : i32, i32, i32
  }
  func.func @transform_1(%arg0: i32) -> (i32, i32, i32) {
    %c0_i32 = arith.constant 0 : i32
    %c0_i32_0 = arith.constant 0 : i32
    %c0_i32_1 = arith.constant 0 : i32
    return %arg0, %c0_i32, %c0_i32_0 : i32, i32, i32
  }
  func.func @transform_2(%arg0: i32) -> (i32, i32) {
    %c0_i32 = arith.constant 0 : i32
    %c0_i32_0 = arith.constant 0 : i32
    %c0_i32_1 = arith.constant 0 : i32
    return %c0_i32, %c0_i32_0 : i32, i32
  }
  func.func @transform_3(%arg0: i32) -> (i32, i32) {
    %c0_i32 = arith.constant 0 : i32
    %c0_i32_0 = arith.constant 0 : i32
    %c0_i32_1 = arith.constant 0 : i32
    return %c0_i32, %c0_i32_0 : i32, i32
  }
  func.func @transform_4(%arg0: i32) -> (i32, i32) {
    %c0_i32 = arith.constant 0 : i32
    %c0_i32_0 = arith.constant 0 : i32
    %c0_i32_1 = arith.constant 0 : i32
    return %c0_i32, %c0_i32_0 : i32, i32
  }
  func.func @transform_5(%arg0: i32) -> (i32, i32) {
    %c0_i32 = arith.constant 0 : i32
    %c0_i32_0 = arith.constant 0 : i32
    %c0_i32_1 = arith.constant 0 : i32
    return %c0_i32, %c0_i32_0 : i32, i32
  }
  func.func @transform_6(%arg0: i32) -> (i32, i32) {
    %c0_i32 = arith.constant 0 : i32
    %c0_i32_0 = arith.constant 0 : i32
    %c0_i32_1 = arith.constant 0 : i32
    return %c0_i32, %c0_i32_0 : i32, i32
  }
  func.func @transform_7(%arg0: i32) -> (i32, i32) {
    %c0_i32 = arith.constant 0 : i32
    %c0_i32_0 = arith.constant 0 : i32
    %c0_i32_1 = arith.constant 0 : i32
    return %c0_i32, %c0_i32_0 : i32, i32
  }
  func.func @transform_8(%arg0: i32) -> (i32, i32) {
    %c0_i32 = arith.constant 0 : i32
    %c0_i32_0 = arith.constant 0 : i32
    %c0_i32_1 = arith.constant 0 : i32
    return %c0_i32, %c0_i32_0 : i32, i32
  }
  func.func @transform_9(%arg0: i32) -> (i32, i32) {
    %c0_i32 = arith.constant 0 : i32
    %c0_i32_0 = arith.constant 0 : i32
    %c0_i32_1 = arith.constant 0 : i32
    return %c0_i32, %c0_i32_0 : i32, i32
  }
  func.func @transform_10(%arg0: i32) -> (i32, i32) {
    %c0_i32 = arith.constant 0 : i32
    %c0_i32_0 = arith.constant 0 : i32
    %c0_i32_1 = arith.constant 0 : i32
    return %c0_i32, %c0_i32_0 : i32, i32
  }
  func.func @transform_11(%arg0: i32) -> (i32, i32) {
    %c0_i32 = arith.constant 0 : i32
    %c0_i32_0 = arith.constant 0 : i32
    %c0_i32_1 = arith.constant 0 : i32
    return %c0_i32, %c0_i32_0 : i32, i32
  }
  func.func @transform_12(%arg0: i32) -> (i32, i32) {
    %c0_i32 = arith.constant 0 : i32
    %c0_i32_0 = arith.constant 0 : i32
    %c0_i32_1 = arith.constant 0 : i32
    return %c0_i32, %c0_i32_0 : i32, i32
  }
  func.func @transform_13(%arg0: i32) -> (i32, i32) {
    %c0_i32 = arith.constant 0 : i32
    %c0_i32_0 = arith.constant 0 : i32
    %c0_i32_1 = arith.constant 0 : i32
    return %c0_i32, %c0_i32_0 : i32, i32
  }
  func.func @transform_14(%arg0: i32) -> (i32, i32, i32) {
    %c0_i32 = arith.constant 0 : i32
    %c0_i32_0 = arith.constant 0 : i32
    %c0_i32_1 = arith.constant 0 : i32
    return %arg0, %c0_i32, %c0_i32_0 : i32, i32, i32
  }
}

module attributes {stable_mosaic.version = 11 : i64} {
  func.func @_qa_head_kernel(%arg0: i32, %arg1: memref<16x32xf32, #tpu.memory_space<vmem>>, %arg2: memref<16x32xf32, #tpu.memory_space<vmem>>, %arg3: memref<32x64xf32, #tpu.memory_space<vmem>>, %arg4: memref<32x64xf32, #tpu.memory_space<vmem>>, %arg5: memref<1x64xf32, #tpu.memory_space<vmem>>, %arg6: memref<64x128xf32, #tpu.memory_space<vmem>>, %arg7: memref<1x128xf32, #tpu.memory_space<vmem>>, %arg8: memref<16x128xf32, #tpu.memory_space<vmem>>) attributes {dimension_semantics = [#tpu.dimension_semantics<parallel>], iteration_bounds = array<i64: 1>, scalar_prefetch = 0 : i64, scratch_operands = 0 : i64, tpu.core_type = #tpu.core_type<tc>, window_params = [{transform_indices = @transform_0, window_bounds = array<i64: 16, 32>}, {transform_indices = @transform_1, window_bounds = array<i64: 16, 32>}, {pipeline_mode = #tpu.pipeline_mode<synchronous>, transform_indices = @transform_2, window_bounds = array<i64: 32, 64>}, {pipeline_mode = #tpu.pipeline_mode<synchronous>, transform_indices = @transform_3, window_bounds = array<i64: 32, 64>}, {pipeline_mode = #tpu.pipeline_mode<synchronous>, transform_indices = @transform_4, window_bounds = array<i64: 1, 64>}, {pipeline_mode = #tpu.pipeline_mode<synchronous>, transform_indices = @transform_5, window_bounds = array<i64: 64, 128>}, {pipeline_mode = #tpu.pipeline_mode<synchronous>, transform_indices = @transform_6, window_bounds = array<i64: 1, 128>}, {transform_indices = @transform_7, window_bounds = array<i64: 16, 128>}]} {
    %c0 = arith.constant 0 : index
    %c0_0 = arith.constant 0 : index
    %0 = vector.load %arg1[%c0, %c0_0] : memref<16x32xf32, #tpu.memory_space<vmem>>, vector<16x32xf32>
    %c0_1 = arith.constant 0 : index
    %c0_2 = arith.constant 0 : index
    %1 = vector.load %arg3[%c0_1, %c0_2] : memref<32x64xf32, #tpu.memory_space<vmem>>, vector<32x64xf32>
    %cst = arith.constant dense<0.000000e+00> : vector<16x64xf32>
    %2 = tpu.matmul %0, %1, %cst {dimension_numbers = #tpu.dot_dimension_numbers<[1], [0], [0], [1], [0, 0, 1, 1], [], []>} : vector<16x32xf32>, vector<32x64xf32>, vector<16x64xf32> -> vector<16x64xf32>
    %c0_3 = arith.constant 0 : index
    %c0_4 = arith.constant 0 : index
    %3 = vector.load %arg2[%c0_3, %c0_4] : memref<16x32xf32, #tpu.memory_space<vmem>>, vector<16x32xf32>
    %c0_5 = arith.constant 0 : index
    %c0_6 = arith.constant 0 : index
    %4 = vector.load %arg4[%c0_5, %c0_6] : memref<32x64xf32, #tpu.memory_space<vmem>>, vector<32x64xf32>
    %cst_7 = arith.constant dense<0.000000e+00> : vector<16x64xf32>
    %5 = tpu.matmul %3, %4, %cst_7 {dimension_numbers = #tpu.dot_dimension_numbers<[1], [0], [0], [1], [0, 0, 1, 1], [], []>} : vector<16x32xf32>, vector<32x64xf32>, vector<16x64xf32> -> vector<16x64xf32>
    %6 = arith.addf %2, %5 : vector<16x64xf32>
    %c0_8 = arith.constant 0 : index
    %c0_9 = arith.constant 0 : index
    %7 = vector.load %arg5[%c0_8, %c0_9] : memref<1x64xf32, #tpu.memory_space<vmem>>, vector<1x64xf32>
    %8 = vector.broadcast %7 : vector<1x64xf32> to vector<16x64xf32>
    %9 = arith.addf %6, %8 : vector<16x64xf32>
    %cst_10 = arith.constant 0.000000e+00 : f32
    %10 = vector.broadcast %cst_10 : f32 to vector<16x64xf32>
    %11 = arith.cmpf ogt, %9, %10 : vector<16x64xf32>
    %cst_11 = arith.constant 0.00999999977 : f32
    %12 = vector.broadcast %cst_11 : f32 to vector<16x64xf32>
    %13 = arith.mulf %12, %9 : vector<16x64xf32>
    %14 = arith.select %11, %9, %13 : vector<16x64xi1>, vector<16x64xf32>
    %c0_12 = arith.constant 0 : index
    %c0_13 = arith.constant 0 : index
    %15 = vector.load %arg6[%c0_12, %c0_13] : memref<64x128xf32, #tpu.memory_space<vmem>>, vector<64x128xf32>
    %cst_14 = arith.constant dense<0.000000e+00> : vector<16x128xf32>
    %16 = tpu.matmul %14, %15, %cst_14 {dimension_numbers = #tpu.dot_dimension_numbers<[1], [0], [0], [1], [0, 0, 1, 1], [], []>} : vector<16x64xf32>, vector<64x128xf32>, vector<16x128xf32> -> vector<16x128xf32>
    %c0_15 = arith.constant 0 : index
    %c0_16 = arith.constant 0 : index
    %17 = vector.load %arg7[%c0_15, %c0_16] : memref<1x128xf32, #tpu.memory_space<vmem>>, vector<1x128xf32>
    %18 = vector.broadcast %17 : vector<1x128xf32> to vector<16x128xf32>
    %19 = arith.addf %16, %18 : vector<16x128xf32>
    %c0_17 = arith.constant 0 : index
    %c0_18 = arith.constant 0 : index
    %20 = vector.load %arg8[%c0_17, %c0_18] : memref<16x128xf32, #tpu.memory_space<vmem>>, vector<16x128xf32>
    tpu.vector_store %arg8[%c0_17, %c0_18], %19 {strides = array<i32>} : memref<16x128xf32, #tpu.memory_space<vmem>>, vector<16x128xf32>,
    return
  }
  func.func @transform_0(%arg0: i32) -> (i32, i32) {
    %c0_i32 = arith.constant 0 : i32
    %c0_i32_0 = arith.constant 0 : i32
    return %arg0, %c0_i32 : i32, i32
  }
  func.func @transform_1(%arg0: i32) -> (i32, i32) {
    %c0_i32 = arith.constant 0 : i32
    %c0_i32_0 = arith.constant 0 : i32
    return %arg0, %c0_i32 : i32, i32
  }
  func.func @transform_2(%arg0: i32) -> (i32, i32) {
    %c0_i32 = arith.constant 0 : i32
    %c0_i32_0 = arith.constant 0 : i32
    %c0_i32_1 = arith.constant 0 : i32
    return %c0_i32, %c0_i32_0 : i32, i32
  }
  func.func @transform_3(%arg0: i32) -> (i32, i32) {
    %c0_i32 = arith.constant 0 : i32
    %c0_i32_0 = arith.constant 0 : i32
    %c0_i32_1 = arith.constant 0 : i32
    return %c0_i32, %c0_i32_0 : i32, i32
  }
  func.func @transform_4(%arg0: i32) -> (i32, i32) {
    %c0_i32 = arith.constant 0 : i32
    %c0_i32_0 = arith.constant 0 : i32
    %c0_i32_1 = arith.constant 0 : i32
    return %c0_i32, %c0_i32_0 : i32, i32
  }
  func.func @transform_5(%arg0: i32) -> (i32, i32) {
    %c0_i32 = arith.constant 0 : i32
    %c0_i32_0 = arith.constant 0 : i32
    %c0_i32_1 = arith.constant 0 : i32
    return %c0_i32, %c0_i32_0 : i32, i32
  }
  func.func @transform_6(%arg0: i32) -> (i32, i32) {
    %c0_i32 = arith.constant 0 : i32
    %c0_i32_0 = arith.constant 0 : i32
    %c0_i32_1 = arith.constant 0 : i32
    return %c0_i32, %c0_i32_0 : i32, i32
  }
  func.func @transform_7(%arg0: i32) -> (i32, i32) {
    %c0_i32 = arith.constant 0 : i32
    %c0_i32_0 = arith.constant 0 : i32
    return %arg0, %c0_i32 : i32, i32
  }
}

</mosaic_0001>

<llo_original>
// kernel: qa_lang_model_forward.9
$region0: #{qa_lang_model_forward.9}
  #allocation0 [shape = 'u32[]', space=smem, size = 0x4, offset = 0x4, fixed_abs, tag = 'smem constant byte address 0x4 - core index']
  #allocation1 [shape = 'u32[144,128]{1,0:T(1,128)}', space=vmem, size = 0x12000, scoped, tag = 'internal scratch']
  %s0 = inlined_call_operand.vmem [shape: f32[16,32], index: 0, kind: input, shape index: {}]
  %s1 = inlined_call_operand.vmem [shape: f32[16,32], index: 1, kind: input, shape index: {}]
  %s2 = inlined_call_operand.vmem [shape: f32[32,64], index: 2, kind: input, shape index: {}]
  %s3 = inlined_call_operand.vmem [shape: f32[32,64], index: 3, kind: input, shape index: {}]
  %s4 = inlined_call_operand.vmem [shape: f32[1,64], index: 4, kind: input, shape index: {}]
  %s5 = inlined_call_operand.vmem [shape: f32[64,128], index: 5, kind: input, shape index: {}]
  %s6 = inlined_call_operand.vmem [shape: f32[1,128], index: 6, kind: input, shape index: {}]
  %s7 = inlined_call_operand.vmem [shape: f32[16,128], index: 7, kind: output, shape index: {}]
  %s8 = sld [smem:[#allocation0]]
  $region38: #{qa_lang_model_forward.9} parent=0
    _
  %s10 = ssub.s32 1, %s8
  %s11 = scalar_select 0, %s10, %s8
  // Predicated region
  $region2: #{qa_lang_model_forward.9} parent=0 // pred_check
    _
  $region3: #{qa_lang_model_forward.9} parent=0 // pred_check_branch
    %13 = sbr.rel (0) target = $region5
  $region4: #{qa_lang_model_forward.9} parent=0 // pred_region
    _
  $region5: #{qa_lang_model_forward.9} parent=0 // pred_fallthru
    _
  // Predicated region
  $region6: #{qa_lang_model_forward.9} parent=0 // pred_check
    _
  $region7: #{qa_lang_model_forward.9} parent=0 // pred_check_branch
    %15 = sbr.rel (0) target = $region9
  $region8: #{qa_lang_model_forward.9} parent=0 // pred_region
    _
  $region9: #{qa_lang_model_forward.9} parent=0 // pred_fallthru
    _
  // Predicated region
  $region10: #{qa_lang_model_forward.9} parent=0 // pred_check
    _
  $region11: #{qa_lang_model_forward.9} parent=0 // pred_check_branch
    %17 = sbr.rel (0) target = $region13
  $region12: #{qa_lang_model_forward.9} parent=0 // pred_region
    _
  $region13: #{qa_lang_model_forward.9} parent=0 // pred_fallthru
    _
  // Predicated region
  $region14: #{qa_lang_model_forward.9} parent=0 // pred_check
    _
  $region15: #{qa_lang_model_forward.9} parent=0 // pred_check_branch
    %19 = sbr.rel (0) target = $region17
  $region16: #{qa_lang_model_forward.9} parent=0 // pred_region
    _
  $region17: #{qa_lang_model_forward.9} parent=0 // pred_fallthru
    _
  // Predicated region
  $region18: #{qa_lang_model_forward.9} parent=0 // pred_check
    _
  $region19: #{qa_lang_model_forward.9} parent=0 // pred_check_branch
    %21 = sbr.rel (0) target = $region21
  $region20: #{qa_lang_model_forward.9} parent=0 // pred_region
    _
  $region21: #{qa_lang_model_forward.9} parent=0 // pred_fallthru
    _
  // Predicated region
  $region22: #{qa_lang_model_forward.9} parent=0 // pred_check
    _
  $region23: #{qa_lang_model_forward.9} parent=0 // pred_check_branch
    %23 = sbr.rel (0) target = $region25
  $region24: #{qa_lang_model_forward.9} parent=0 // pred_region
    _
  $region25: #{qa_lang_model_forward.9} parent=0 // pred_fallthru
    _
  // Predicated region
  $region26: #{qa_lang_model_forward.9} parent=0 // pred_check
    _
  $region27: #{qa_lang_model_forward.9} parent=0 // pred_check_branch
    %25 = sbr.rel (0) target = $region29
  $region28: #{qa_lang_model_forward.9} parent=0 // pred_region
    _
  $region29: #{qa_lang_model_forward.9} parent=0 // pred_fallthru
    _
  %v26 = vld [vmem:[%s0] sm:$0xff]
  %v27 = vld [vmem:[%s0 + $0x8] sm:$0xff]
  %v28 = vld [vmem:[%s2] sm:$0xff]
  %v29 = vld [vmem:[%s2 + $0x8] sm:$0xff]
  %v30 = vld [vmem:[%s2 + $0x10] sm:$0xff]
  %v31 = vld [vmem:[%s2 + $0x18] sm:$0xff]
  %v32 = vld [vmem:[%s1] sm:$0xff]
  %v33 = vld [vmem:[%s1 + $0x8] sm:$0xff]
  %v34 = vld [vmem:[%s3] sm:$0xff]
  %v35 = vld [vmem:[%s3 + $0x8] sm:$0xff]
  %v36 = vld [vmem:[%s3 + $0x10] sm:$0xff]
  %v37 = vld [vmem:[%s3 + $0x18] sm:$0xff]
  %vm38 = vcmask 261120
  %v40 = vsel %vm38, %v32, 0
  %v43 = vsel %vm38, %v33, 0
  %45 = vmatprep.subr.mxu0 0.0
  %46 = vmatpush1.msra.mxu0 %v34
  %47 = vmatprep.subr.mxu0 0.0
  %48 = vmatpush1.msra.mxu0 %v35
  %49 = vmatprep.subr.mxu0 0.0
  %50 = vmatpush1.msra.mxu0 %v36
  %51 = vmatprep.subr.mxu0 0.0
  %52 = vmatpush1.msra.mxu0 %v37
  %53 = vmatprep.subr.mxu0 0.0
  %54 = vmatpush1.msra.mxu0 0.0
  %55 = vmatprep.subr.mxu0 0.0
  %56 = vmatpush1.msra.mxu0 0.0
  %57 = vmatprep.subr.mxu0 0.0
  %58 = vmatpush1.msra.mxu0 0.0
  %59 = vmatprep.subr.mxu0 0.0
  %60 = vmatpush1.msra.mxu0 0.0
  %61 = vmatprep.subr.mxu0 0.0
  %62 = vmatpush1.msra.mxu0 0.0
  %63 = vmatprep.subr.mxu0 0.0
  %64 = vmatpush1.msra.mxu0 0.0
  %65 = vmatprep.subr.mxu0 0.0
  %66 = vmatpush1.msra.mxu0 0.0
  %67 = vmatprep.subr.mxu0 0.0
  %68 = vmatpush1.msra.mxu0 0.0
  %69 = vmatprep.subr.mxu0 0.0
  %70 = vmatpush1.msra.mxu0 0.0
  %71 = vmatprep.subr.mxu0 0.0
  %72 = vmatpush1.msra.mxu0 0.0
  %73 = vmatprep.subr.mxu0 0.0
  %74 = vmatpush1.msra.mxu0 0.0
  %75 = vmatprep.subr.mxu0 0.0
  %76 = vmatpush1.msra.mxu0 0.0
  %77 = vmatprep.subr.mxu0 0.0
  %78 = vmatpush1.msra.mxu0 0.0
  %79 = vmatprep.subr.mxu0 0.0
  %80 = vmatpush1.msra.mxu0 0.0
  %81 = vmatprep.subr.mxu0 0.0
  %82 = vmatpush1.msra.mxu0 0.0
  %83 = vmatprep.subr.mxu0 0.0
  %84 = vmatpush1.msra.mxu0 0.0
  %85 = vmatprep.subr.mxu0 0.0
  %86 = vmatpush1.msra.mxu0 0.0
  %87 = vmatprep.subr.mxu0 0.0
  %88 = vmatpush1.msra.mxu0 0.0
  %89 = vmatprep.subr.mxu0 0.0
  %90 = vmatpush1.msra.mxu0 0.0
  %91 = vmatprep.subr.mxu0 0.0
  %92 = vmatpush1.msra.mxu0 0.0
  %93 = vmatprep.subr.mxu0 0.0
  %94 = vmatpush1.msra.mxu0 0.0
  %95 = vmatprep.subr.mxu0 0.0
  %96 = vmatpush1.msra.mxu0 0.0
  %97 = vmatprep.subr.mxu0 0.0
  %98 = vmatpush1.msra.mxu0 0.0
  %99 = vmatprep.subr.mxu0 0.0
  %100 = vmatpush1.msra.mxu0 0.0
  %101 = vmatprep.subr.mxu0 0.0
  %102 = vmatpush1.msra.mxu0 0.0
  %103 = vmatprep.subr.mxu0 0.0
  %104 = vmatpush1.msra.mxu0 0.0
  %105 = vmatprep.subr.mxu0 0.0
  %106 = vmatpush1.msra.mxu0 0.0
  %107 = vmatprep.subr.mxu0 0.0
  %108 = vmatpush1.msra.mxu0 0.0
  %109 = vmatprep.mubr.f32.mxu0 0.0
  %110 = vmatmul.mubr.f32.gmra.mrb[0].mxu0 %v40
  %v111 = vpop.f32.mrb[0].mxu0
  %v112 = vadd.f32 0.0, %v111
  %v113 = vpop.f32.mrb[0].mxu0
  %114 = vmatprep.mubr.f32.mxu0 0.0
  %115 = vmatmul.mubr.f32.gmra.mrb[0].mxu0 %v43
  %v116 = vpop.f32.mrb[0].mxu0
  %v117 = vadd.f32 0.0, %v116
  %v118 = vpop.f32.mrb[0].mxu0
  %119 = vdwg.mxu0
  %v121 = vsel %vm38, %v26, 0
  %v124 = vsel %vm38, %v27, 0
  %126 = vmatprep.subr.mxu0 0.0
  %127 = vmatpush1.msra.mxu0 %v28
  %128 = vmatprep.subr.mxu0 0.0
  %129 = vmatpush1.msra.mxu0 %v29
  %130 = vmatprep.subr.mxu0 0.0
  %131 = vmatpush1.msra.mxu0 %v30
  %132 = vmatprep.subr.mxu0 0.0
  %133 = vmatpush1.msra.mxu0 %v31
  %134 = vmatprep.subr.mxu0 0.0
  %135 = vmatpush1.msra.mxu0 0.0
  %136 = vmatprep.subr.mxu0 0.0
  %137 = vmatpush1.msra.mxu0 0.0
  %138 = vmatprep.subr.mxu0 0.0
  %139 = vmatpush1.msra.mxu0 0.0
  %140 = vmatprep.subr.mxu0 0.0
  %141 = vmatpush1.msra.mxu0 0.0
  %142 = vmatprep.subr.mxu0 0.0
  %143 = vmatpush1.msra.mxu0 0.0
  %144 = vmatprep.subr.mxu0 0.0
  %145 = vmatpush1.msra.mxu0 0.0
  %146 = vmatprep.subr.mxu0 0.0
  %147 = vmatpush1.msra.mxu0 0.0
  %148 = vmatprep.subr.mxu0 0.0
  %149 = vmatpush1.msra.mxu0 0.0
  %150 = vmatprep.subr.mxu0 0.0
  %151 = vmatpush1.msra.mxu0 0.0
  %152 = vmatprep.subr.mxu0 0.0
  %153 = vmatpush1.msra.mxu0 0.0
  %154 = vmatprep.subr.mxu0 0.0
  %155 = vmatpush1.msra.mxu0 0.0
  %156 = vmatprep.subr.mxu0 0.0
  %157 = vmatpush1.msra.mxu0 0.0
  %158 = vmatprep.subr.mxu0 0.0
  %159 = vmatpush1.msra.mxu0 0.0
  %160 = vmatprep.subr.mxu0 0.0
  %161 = vmatpush1.msra.mxu0 0.0
  %162 = vmatprep.subr.mxu0 0.0
  %163 = vmatpush1.msra.mxu0 0.0
  %164 = vmatprep.subr.mxu0 0.0
  %165 = vmatpush1.msra.mxu0 0.0
  %166 = vmatprep.subr.mxu0 0.0
  %167 = vmatpush1.msra.mxu0 0.0
  %168 = vmatprep.subr.mxu0 0.0
  %169 = vmatpush1.msra.mxu0 0.0
  %170 = vmatprep.subr.mxu0 0.0
  %171 = vmatpush1.msra.mxu0 0.0
  %172 = vmatprep.subr.mxu0 0.0
  %173 = vmatpush1.msra.mxu0 0.0
  %174 = vmatprep.subr.mxu0 0.0
  %175 = vmatpush1.msra.mxu0 0.0
  %176 = vmatprep.subr.mxu0 0.0
  %177 = vmatpush1.msra.mxu0 0.0
  %178 = vmatprep.subr.mxu0 0.0
  %179 = vmatpush1.msra.mxu0 0.0
  %180 = vmatprep.subr.mxu0 0.0
  %181 = vmatpush1.msra.mxu0 0.0
  %182 = vmatprep.subr.mxu0 0.0
  %183 = vmatpush1.msra.mxu0 0.0
  %184 = vmatprep.subr.mxu0 0.0
  %185 = vmatpush1.msra.mxu0 0.0
  %186 = vmatprep.subr.mxu0 0.0
  %187 = vmatpush1.msra.mxu0 0.0
  %188 = vmatprep.subr.mxu0 0.0
  %189 = vmatpush1.msra.mxu0 0.0
  %190 = vmatprep.mubr.f32.mxu0 0.0
  %191 = vmatmul.mubr.f32.gmra.mrb[0].mxu0 %v121
  %v192 = vpop.f32.mrb[0].mxu0
  %v193 = vadd.f32 %v112, %v192
  %v194 = vpop.f32.mrb[0].mxu0
  %195 = vmatprep.mubr.f32.mxu0 0.0
  %196 = vmatmul.mubr.f32.gmra.mrb[0].mxu0 %v124
  %v197 = vpop.f32.mrb[0].mxu0
  %v198 = vadd.f32 %v117, %v197
  %v199 = vpop.f32.mrb[0].mxu0
  %200 = vdwg.mxu0
  %v201 = vld [vmem:[%s4] sm:$0x1]
  %v203 = vlaneseq
  %v204 = vshrl.u32 %v203, 7
  %v205 = vsub.s32 0, %v204
  %v206 = vrot.slane %v201, %v205
  %v208 = vadd.f32 %v193, %v206
  %v209 = vadd.f32 %v198, %v206
  %vm210 = vcmp.gt.f32.partialorder %v208, 0.0
  %vm211 = vcmp.gt.f32.partialorder %v209, 0.0
  %v212 = vmul.f32 %v208, 0.01
  %v213 = vmul.f32 %v209, 0.01
  %v214 = vsel %vm210, %v208, %v212
  %v215 = vsel %vm211, %v209, %v213
  %v216 = vld [vmem:[%s5] sm:$0xff]
  %v217 = vld [vmem:[%s5 + $0x8] sm:$0xff]
  %v218 = vld [vmem:[%s5 + $0x10] sm:$0xff]
  %v219 = vld [vmem:[%s5 + $0x18] sm:$0xff]
  %v220 = vld [vmem:[%s5 + $0x20] sm:$0xff]
  %v221 = vld [vmem:[%s5 + $0x28] sm:$0xff]
  %v222 = vld [vmem:[%s5 + $0x30] sm:$0xff]
  %v223 = vld [vmem:[%s5 + $0x38] sm:$0xff]
  %v224 = vld [vmem:[%s6] sm:$0x1]
  %v226 = vlaneseq
  %v227 = vshrl.u32 %v226, 7
  %v228 = vsub.s32 0, %v227
  %v229 = vrot.slane %v224, %v228
  %vm231 = vcmask 523264
  %v233 = vsel %vm231, %v214, 0
  %v236 = vsel %vm231, %v215, 0
  %238 = vmatprep.subr.mxu0 0.0
  %239 = vmatpush1.msra.mxu0 %v216
  %240 = vmatprep.subr.mxu0 0.0
  %241 = vmatpush1.msra.mxu0 %v217
  %242 = vmatprep.subr.mxu0 0.0
  %243 = vmatpush1.msra.mxu0 %v218
  %244 = vmatprep.subr.mxu0 0.0
  %245 = vmatpush1.msra.mxu0 %v219
  %246 = vmatprep.subr.mxu0 0.0
  %247 = vmatpush1.msra.mxu0 %v220
  %248 = vmatprep.subr.mxu0 0.0
  %249 = vmatpush1.msra.mxu0 %v221
  %250 = vmatprep.subr.mxu0 0.0
  %251 = vmatpush1.msra.mxu0 %v222
  %252 = vmatprep.subr.mxu0 0.0
  %253 = vmatpush1.msra.mxu0 %v223
  %254 = vmatprep.subr.mxu0 0.0
  %255 = vmatpush1.msra.mxu0 0.0
  %256 = vmatprep.subr.mxu0 0.0
  %257 = vmatpush1.msra.mxu0 0.0
  %258 = vmatprep.subr.mxu0 0.0
  %259 = vmatpush1.msra.mxu0 0.0
  %260 = vmatprep.subr.mxu0 0.0
  %261 = vmatpush1.msra.mxu0 0.0
  %262 = vmatprep.subr.mxu0 0.0
  %263 = vmatpush1.msra.mxu0 0.0
  %264 = vmatprep.subr.mxu0 0.0
  %265 = vmatpush1.msra.mxu0 0.0
  %266 = vmatprep.subr.mxu0 0.0
  %267 = vmatpush1.msra.mxu0 0.0
  %268 = vmatprep.subr.mxu0 0.0
  %269 = vmatpush1.msra.mxu0 0.0
  %270 = vmatprep.subr.mxu0 0.0
  %271 = vmatpush1.msra.mxu0 0.0
  %272 = vmatprep.subr.mxu0 0.0
  %273 = vmatpush1.msra.mxu0 0.0
  %274 = vmatprep.subr.mxu0 0.0
  %275 = vmatpush1.msra.mxu0 0.0
  %276 = vmatprep.subr.mxu0 0.0
  %277 = vmatpush1.msra.mxu0 0.0
  %278 = vmatprep.subr.mxu0 0.0
  %279 = vmatpush1.msra.mxu0 0.0
  %280 = vmatprep.subr.mxu0 0.0
  %281 = vmatpush1.msra.mxu0 0.0
  %282 = vmatprep.subr.mxu0 0.0
  %283 = vmatpush1.msra.mxu0 0.0
  %284 = vmatprep.subr.mxu0 0.0
  %285 = vmatpush1.msra.mxu0 0.0
  %286 = vmatprep.subr.mxu0 0.0
  %287 = vmatpush1.msra.mxu0 0.0
  %288 = vmatprep.subr.mxu0 0.0
  %289 = vmatpush1.msra.mxu0 0.0
  %290 = vmatprep.subr.mxu0 0.0
  %291 = vmatpush1.msra.mxu0 0.0
  %292 = vmatprep.subr.mxu0 0.0
  %293 = vmatpush1.msra.mxu0 0.0
  %294 = vmatprep.subr.mxu0 0.0
  %295 = vmatpush1.msra.mxu0 0.0
  %296 = vmatprep.subr.mxu0 0.0
  %297 = vmatpush1.msra.mxu0 0.0
  %298 = vmatprep.subr.mxu0 0.0
  %299 = vmatpush1.msra.mxu0 0.0
  %300 = vmatprep.subr.mxu0 0.0
  %301 = vmatpush1.msra.mxu0 0.0
  %302 = vmatprep.mubr.f32.mxu0 0.0
  %303 = vmatmul.mubr.f32.gmra.mrb[0].mxu0 %v233
  %v304 = vpop.f32.mrb[0].mxu0
  %v305 = vadd.f32 %v229, %v304
  %v306 = vpop.f32.mrb[0].mxu0
  %307 = vmatprep.mubr.f32.mxu0 0.0
  %308 = vmatmul.mubr.f32.gmra.mrb[0].mxu0 %v236
  %v309 = vpop.f32.mrb[0].mxu0
  %v310 = vadd.f32 %v229, %v309
  %v311 = vpop.f32.mrb[0].mxu0
  %312 = vdwg.mxu0
  %313 = vst [vmem:[%s7] sm:$0xff] %v305
  %314 = vst [vmem:[%s7 + $0x8] sm:$0xff] %v310
  // Predicated region
  $region30: #{qa_lang_model_forward.9} parent=0 // pred_check
    _
  $region31: #{qa_lang_model_forward.9} parent=0 // pred_check_branch
    %316 = sbr.rel (0) target = $region33
  $region32: #{qa_lang_model_forward.9} parent=0 // pred_region
    _
  $region33: #{qa_lang_model_forward.9} parent=0 // pred_fallthru
    _
  // Predicated region
  $region34: #{qa_lang_model_forward.9} parent=0 // pred_check
    _
  $region35: #{qa_lang_model_forward.9} parent=0 // pred_check_branch
    %318 = sbr.rel (0) target = $region37
  $region36: #{qa_lang_model_forward.9} parent=0 // pred_region
    _
  $region37: #{qa_lang_model_forward.9} parent=0 // pred_fallthru
    _

// kernel: qa_lang_model_forward.5
$region0: #{qa_lang_model_forward.5}
  #allocation0 [shape = 'u32[]', space=smem, size = 0x4, offset = 0x4, fixed_abs, tag = 'smem constant byte address 0x4 - core index']
  #allocation1 [shape = 'u32[144,128]{1,0:T(1,128)}', space=vmem, size = 0x12000, scoped, tag = 'internal scratch']
  %s0 = inlined_call_operand.vmem [shape: f32[2,8,32], index: 0, kind: input, shape index: {}]
  %s1 = inlined_call_operand.vmem [shape: f32[2,1,8], index: 1, kind: input, shape index: {}]
  %s2 = inlined_call_operand.vmem [shape: f32[32,96], index: 2, kind: input, shape index: {}]
  %s3 = inlined_call_operand.vmem [shape: f32[1,96], index: 3, kind: input, shape index: {}]
  %s4 = inlined_call_operand.vmem [shape: f32[32,32], index: 4, kind: input, shape index: {}]
  %s5 = inlined_call_operand.vmem [shape: f32[1,32], index: 5, kind: input, shape index: {}, may-alias: {5,7,11,13}]
  %s6 = inlined_call_operand.vmem [shape: f32[1,32], index: 6, kind: input, shape index: {}, may-alias: {6,12}]
  %s7 = inlined_call_operand.vmem [shape: f32[1,32], index: 7, kind: input, shape index: {}, may-alias: {5,7,11,13}]
  %s8 = inlined_call_operand.vmem [shape: f32[32,128], index: 8, kind: input, shape index: {}]
  %s9 = inlined_call_operand.vmem [shape: f32[1,128], index: 9, kind: input, shape index: {}]
  %s10 = inlined_call_operand.vmem [shape: f32[128,32], index: 10, kind: input, shape index: {}]
  %s11 = inlined_call_operand.vmem [shape: f32[1,32], index: 11, kind: input, shape index: {}, may-alias: {5,7,11,13}]
  %s12 = inlined_call_operand.vmem [shape: f32[1,32], index: 12, kind: input, shape index: {}, may-alias: {6,12}]
  %s13 = inlined_call_operand.vmem [shape: f32[1,32], index: 13, kind: input, shape index: {}, may-alias: {5,7,11,13}]
  %s14 = inlined_call_operand.vmem [shape: f32[2,8,32], index: 14, kind: output, shape index: {}]
  %s15 = sld [smem:[#allocation0]]
  $region89: #{qa_lang_model_forward.5} parent=0
    _
  %s17 = ssub.s32 1, %s15
  %s18 = scalar_select 0, %s17, %s15
  loop: start=0, step=1, limit=4
  $region2: #{qa_lang_model_forward.5} parent=0 // loop_pre_header
    _
  $region3: #{qa_lang_model_forward.5} parent=0 // loop_header
    %s20 = sphi 0, %s24
    %p21 = scmp.ge.s32.totalorder %s20, 4
    %s30 = sphi 0, %s32
    %s33 = sphi 0, %s30
    %s34 = sphi 0, %s33
    %s50 = sphi 0, %s34
    %s56 = sphi 0, %s58
    %s59 = sphi 0, %s56
    %s60 = sphi 0, %s59
    %s76 = sphi 0, %s60
    %s80 = sphi 0, %s80
    %s82 = sphi 0, %s80
    %s83 = sphi 0, %s82
    %s97 = sphi 0, %s83
    %s101 = sphi 0, %s101
    %s103 = sphi 0, %s101
    %s104 = sphi 0, %s103
    %s118 = sphi 0, %s104
    %s122 = sphi 0, %s122
    %s124 = sphi 0, %s122
    %s125 = sphi 0, %s124
    %s139 = sphi 0, %s125
    %s143 = sphi 0, %s143
    %s145 = sphi 0, %s143
    %s146 = sphi 0, %s145
    %s160 = sphi 0, %s146
    %s164 = sphi 0, %s164
    %s166 = sphi 0, %s164
    %s167 = sphi 0, %s166
    %s181 = sphi 0, %s167
    %s185 = sphi 0, %s185
    %s187 = sphi 0, %s185
    %s188 = sphi 0, %s187
    %s202 = sphi 0, %s188
    %s206 = sphi 0, %s206
    %s208 = sphi 0, %s206
    %s209 = sphi 0, %s208
    %s223 = sphi 0, %s209
    %s227 = sphi 0, %s227
    %s229 = sphi 0, %s227
    %s230 = sphi 0, %s229
    %s244 = sphi 0, %s230
    %s248 = sphi 0, %s248
    %s250 = sphi 0, %s248
    %s251 = sphi 0, %s250
    %s265 = sphi 0, %s251
    %s269 = sphi 0, %s269
    %s271 = sphi 0, %s269
    %s272 = sphi 0, %s271
    %s286 = sphi 0, %s272
    %s290 = sphi 0, %s290
    %s292 = sphi 0, %s290
    %s293 = sphi 0, %s292
    %s307 = sphi 0, %s293
    %s311 = sphi 0, %s311
    %s313 = sphi 0, %s311
    %s314 = sphi 0, %s313
    %s328 = sphi 0, %s314
    %s334 = sphi 0, %s336
    %s337 = sphi 0, %s334
    %s338 = sphi 0, %s337
    %s354 = sphi 0, %s338
  $region4: #{qa_lang_model_forward.5} parent=0 // loop_header_branch
    %23 = sbr.rel (%p21) target = $region8
  $region5: #{qa_lang_model_forward.5} parent=0 // loop_body
    %s25 = ssub.s32 %s20, 1
    %s26 = ssub.s32 %s20, 2
    %s27 = sadd.s32 %s20, 1
    %s28 = ssub.s32 %s20, %s27
    %p29 = scmp.eq.s32.totalorder %s28, 0
    %s31 = sadd.s32 %s30, 1
    %s32 = scalar_select %p29, %s30, %s31
    %p35 = pneg %p29
    %p36 = scmp.eq.s32.totalorder %s20, 1
    %p37 = por %p35, %p36
    %p38 = scmp.ne.s32.totalorder %s30, %s33
    %p39 = scmp.eq.s32.totalorder %s20, 0
    %p40 = por %p38, %p39
    %p41 = scmp.ne.s32.totalorder %s30, %s33
    %p42 = scmp.eq.s32.totalorder %s25, 1
    %p43 = por %p41, %p42
    %p44 = scmp.ne.s32.totalorder %s33, %s34
    %p45 = scmp.eq.s32.totalorder %s25, 0
    %p46 = por %p44, %p45
    %p47 = scmp.ne.s32.totalorder %s33, %s34
    %p48 = scmp.eq.s32.totalorder %s26, 1
    %p49 = por %p47, %p48
    %p51 = scmp.ne.s32.totalorder %s34, %s50
    %p52 = scmp.eq.s32.totalorder %s26, 0
    %p53 = por %p51, %p52
    %s54 = ssub.s32 %s20, %s27
    %p55 = scmp.eq.s32.totalorder %s54, 0
    %s57 = sadd.s32 %s56, 1
    %s58 = scalar_select %p55, %s56, %s57
    %p61 = pneg %p55
    %p62 = scmp.eq.s32.totalorder %s20, 1
    %p63 = por %p61, %p62
    %p64 = scmp.ne.s32.totalorder %s56, %s59
    %p65 = scmp.eq.s32.totalorder %s20, 0
    %p66 = por %p64, %p65
    %p67 = scmp.ne.s32.totalorder %s56, %s59
    %p68 = scmp.eq.s32.totalorder %s25, 1
    %p69 = por %p67, %p68
    %p70 = scmp.ne.s32.totalorder %s59, %s60
    %p71 = scmp.eq.s32.totalorder %s25, 0
    %p72 = por %p70, %p71
    %p73 = scmp.ne.s32.totalorder %s59, %s60
    %p74 = scmp.eq.s32.totalorder %s26, 1
    %p75 = por %p73, %p74
    %p77 = scmp.ne.s32.totalorder %s60, %s76
    %p78 = scmp.eq.s32.totalorder %s26, 0
    %p79 = por %p77, %p78
    %s81 = sadd.s32 %s80, 1
    %p84 = scmp.eq.s32.totalorder %s20, 1
    %p85 = scmp.ne.s32.totalorder %s80, %s82
    %p86 = scmp.eq.s32.totalorder %s20, 0
    %p87 = por %p85, %p86
    %p88 = scmp.ne.s32.totalorder %s80, %s82
    %p89 = scmp.eq.s32.totalorder %s25, 1
    %p90 = por %p88, %p89
    %p91 = scmp.ne.s32.totalorder %s82, %s83
    %p92 = scmp.eq.s32.totalorder %s25, 0
    %p93 = por %p91, %p92
    %p94 = scmp.ne.s32.totalorder %s82, %s83
    %p95 = scmp.eq.s32.totalorder %s26, 1
    %p96 = por %p94, %p95
    %p98 = scmp.ne.s32.totalorder %s83, %s97
    %p99 = scmp.eq.s32.totalorder %s26, 0
    %p100 = por %p98, %p99
    %s102 = sadd.s32 %s101, 1
    %p105 = scmp.eq.s32.totalorder %s20, 1
    %p106 = scmp.ne.s32.totalorder %s101, %s103
    %p107 = scmp.eq.s32.totalorder %s20, 0
    %p108 = por %p106, %p107
    %p109 = scmp.ne.s32.totalorder %s101, %s103
    %p110 = scmp.eq.s32.totalorder %s25, 1
    %p111 = por %p109, %p110
    %p112 = scmp.ne.s32.totalorder %s103, %s104
    %p113 = scmp.eq.s32.totalorder %s25, 0
    %p114 = por %p112, %p113
    %p115 = scmp.ne.s32.totalorder %s103, %s104
    %p116 = scmp.eq.s32.totalorder %s26, 1
    %p117 = por %p115, %p116
    %p119 = scmp.ne.s32.totalorder %s104, %s118
    %p120 = scmp.eq.s32.totalorder %s26, 0
    %p121 = por %p119, %p120
    %s123 = sadd.s32 %s122, 1
    %p126 = scmp.eq.s32.totalorder %s20, 1
    %p127 = scmp.ne.s32.totalorder %s122, %s124
    %p128 = scmp.eq.s32.totalorder %s20, 0
    %p129 = por %p127, %p128
    %p130 = scmp.ne.s32.totalorder %s122, %s124
    %p131 = scmp.eq.s32.totalorder %s25, 1
    %p132 = por %p130, %p131
    %p133 = scmp.ne.s32.totalorder %s124, %s125
    %p134 = scmp.eq.s32.totalorder %s25, 0
    %p135 = por %p133, %p134
    %p136 = scmp.ne.s32.totalorder %s124, %s125
    %p137 = scmp.eq.s32.totalorder %s26, 1
    %p138 = por %p136, %p137
    %p140 = scmp.ne.s32.totalorder %s125, %s139
    %p141 = scmp.eq.s32.totalorder %s26, 0
    %p142 = por %p140, %p141
    %s144 = sadd.s32 %s143, 1
    %p147 = scmp.eq.s32.totalorder %s20, 1
    %p148 = scmp.ne.s32.totalorder %s143, %s145
    %p149 = scmp.eq.s32.totalorder %s20, 0
    %p150 = por %p148, %p149
    %p151 = scmp.ne.s32.totalorder %s143, %s145
    %p152 = scmp.eq.s32.totalorder %s25, 1
    %p153 = por %p151, %p152
    %p154 = scmp.ne.s32.totalorder %s145, %s146
    %p155 = scmp.eq.s32.totalorder %s25, 0
    %p156 = por %p154, %p155
    %p157 = scmp.ne.s32.totalorder %s145, %s146
    %p158 = scmp.eq.s32.totalorder %s26, 1
    %p159 = por %p157, %p158
    %p161 = scmp.ne.s32.totalorder %s146, %s160
    %p162 = scmp.eq.s32.totalorder %s26, 0
    %p163 = por %p161, %p162
    %s165 = sadd.s32 %s164, 1
    %p168 = scmp.eq.s32.totalorder %s20, 1
    %p169 = scmp.ne.s32.totalorder %s164, %s166
    %p170 = scmp.eq.s32.totalorder %s20, 0
    %p171 = por %p169, %p170
    %p172 = scmp.ne.s32.totalorder %s164, %s166
    %p173 = scmp.eq.s32.totalorder %s25, 1
    %p174 = por %p172, %p173
    %p175 = scmp.ne.s32.totalorder %s166, %s167
    %p176 = scmp.eq.s32.totalorder %s25, 0
    %p177 = por %p175, %p176
    %p178 = scmp.ne.s32.totalorder %s166, %s167
    %p179 = scmp.eq.s32.totalorder %s26, 1
    %p180 = por %p178, %p179
    %p182 = scmp.ne.s32.totalorder %s167, %s181
    %p183 = scmp.eq.s32.totalorder %s26, 0
    %p184 = por %p182, %p183
    %s186 = sadd.s32 %s185, 1
    %p189 = scmp.eq.s32.totalorder %s20, 1
    %p190 = scmp.ne.s32.totalorder %s185, %s187
    %p191 = scmp.eq.s32.totalorder %s20, 0
    %p192 = por %p190, %p191
    %p193 = scmp.ne.s32.totalorder %s185, %s187
    %p194 = scmp.eq.s32.totalorder %s25, 1
    %p195 = por %p193, %p194
    %p196 = scmp.ne.s32.totalorder %s187, %s188
    %p197 = scmp.eq.s32.totalorder %s25, 0
    %p198 = por %p196, %p197
    %p199 = scmp.ne.s32.totalorder %s187, %s188
    %p200 = scmp.eq.s32.totalorder %s26, 1
    %p201 = por %p199, %p200
    %p203 = scmp.ne.s32.totalorder %s188, %s202
    %p204 = scmp.eq.s32.totalorder %s26, 0
    %p205 = por %p203, %p204
    %s207 = sadd.s32 %s206, 1
    %p210 = scmp.eq.s32.totalorder %s20, 1
    %p211 = scmp.ne.s32.totalorder %s206, %s208
    %p212 = scmp.eq.s32.totalorder %s20, 0
    %p213 = por %p211, %p212
    %p214 = scmp.ne.s32.totalorder %s206, %s208
    %p215 = scmp.eq.s32.totalorder %s25, 1
    %p216 = por %p214, %p215
    %p217 = scmp.ne.s32.totalorder %s208, %s209
    %p218 = scmp.eq.s32.totalorder %s25, 0
    %p219 = por %p217, %p218
    %p220 = scmp.ne.s32.totalorder %s208, %s209
    %p221 = scmp.eq.s32.totalorder %s26, 1
    %p222 = por %p220, %p221
    %p224 = scmp.ne.s32.totalorder %s209, %s223
    %p225 = scmp.eq.s32.totalorder %s26, 0
    %p226 = por %p224, %p225
    %s228 = sadd.s32 %s227, 1
    %p231 = scmp.eq.s32.totalorder %s20, 1
    %p232 = scmp.ne.s32.totalorder %s227, %s229
    %p233 = scmp.eq.s32.totalorder %s20, 0
    %p234 = por %p232, %p233
    %p235 = scmp.ne.s32.totalorder %s227, %s229
    %p236 = scmp.eq.s32.totalorder %s25, 1
    %p237 = por %p235, %p236
    %p238 = scmp.ne.s32.totalorder %s229, %s230
    %p239 = scmp.eq.s32.totalorder %s25, 0
    %p240 = por %p238, %p239
    %p241 = scmp.ne.s32.totalorder %s229, %s230
    %p242 = scmp.eq.s32.totalorder %s26, 1
    %p243 = por %p241, %p242
    %p245 = scmp.ne.s32.totalorder %s230, %s244
    %p246 = scmp.eq.s32.totalorder %s26, 0
    %p247 = por %p245, %p246
    %s249 = sadd.s32 %s248, 1
    %p252 = scmp.eq.s32.totalorder %s20, 1
    %p253 = scmp.ne.s32.totalorder %s248, %s250
    %p254 = scmp.eq.s32.totalorder %s20, 0
    %p255 = por %p253, %p254
    %p256 = scmp.ne.s32.totalorder %s248, %s250
    %p257 = scmp.eq.s32.totalorder %s25, 1
    %p258 = por %p256, %p257
    %p259 = scmp.ne.s32.totalorder %s250, %s251
    %p260 = scmp.eq.s32.totalorder %s25, 0
    %p261 = por %p259, %p260
    %p262 = scmp.ne.s32.totalorder %s250, %s251
    %p263 = scmp.eq.s32.totalorder %s26, 1
    %p264 = por %p262, %p263
    %p266 = scmp.ne.s32.totalorder %s251, %s265
    %p267 = scmp.eq.s32.totalorder %s26, 0
    %p268 = por %p266, %p267
    %s270 = sadd.s32 %s269, 1
    %p273 = scmp.eq.s32.totalorder %s20, 1
    %p274 = scmp.ne.s32.totalorder %s269, %s271
    %p275 = scmp.eq.s32.totalorder %s20, 0
    %p276 = por %p274, %p275
    %p277 = scmp.ne.s32.totalorder %s269, %s271
    %p278 = scmp.eq.s32.totalorder %s25, 1
    %p279 = por %p277, %p278
    %p280 = scmp.ne.s32.totalorder %s271, %s272
    %p281 = scmp.eq.s32.totalorder %s25, 0
    %p282 = por %p280, %p281
    %p283 = scmp.ne.s32.totalorder %s271, %s272
    %p284 = scmp.eq.s32.totalorder %s26, 1
    %p285 = por %p283, %p284
    %p287 = scmp.ne.s32.totalorder %s272, %s286
    %p288 = scmp.eq.s32.totalorder %s26, 0
    %p289 = por %p287, %p288
    %s291 = sadd.s32 %s290, 1
    %p294 = scmp.eq.s32.totalorder %s20, 1
    %p295 = scmp.ne.s32.totalorder %s290, %s292
    %p296 = scmp.eq.s32.totalorder %s20, 0
    %p297 = por %p295, %p296
    %p298 = scmp.ne.s32.totalorder %s290, %s292
    %p299 = scmp.eq.s32.totalorder %s25, 1
    %p300 = por %p298, %p299
    %p301 = scmp.ne.s32.totalorder %s292, %s293
    %p302 = scmp.eq.s32.totalorder %s25, 0
    %p303 = por %p301, %p302
    %p304 = scmp.ne.s32.totalorder %s292, %s293
    %p305 = scmp.eq.s32.totalorder %s26, 1
    %p306 = por %p304, %p305
    %p308 = scmp.ne.s32.totalorder %s293, %s307
    %p309 = scmp.eq.s32.totalorder %s26, 0
    %p310 = por %p308, %p309
    %s312 = sadd.s32 %s311, 1
    %p315 = scmp.eq.s32.totalorder %s20, 1
    %p316 = scmp.ne.s32.totalorder %s311, %s313
    %p317 = scmp.eq.s32.totalorder %s20, 0
    %p318 = por %p316, %p317
    %p319 = scmp.ne.s32.totalorder %s311, %s313
    %p320 = scmp.eq.s32.totalorder %s25, 1
    %p321 = por %p319, %p320
    %p322 = scmp.ne.s32.totalorder %s313, %s314
    %p323 = scmp.eq.s32.totalorder %s25, 0
    %p324 = por %p322, %p323
    %p325 = scmp.ne.s32.totalorder %s313, %s314
    %p326 = scmp.eq.s32.totalorder %s26, 1
    %p327 = por %p325, %p326
    %p329 = scmp.ne.s32.totalorder %s314, %s328
    %p330 = scmp.eq.s32.totalorder %s26, 0
    %p331 = por %p329, %p330
    %s332 = ssub.s32 %s20, %s27
    %p333 = scmp.eq.s32.totalorder %s332, 0
    %s335 = sadd.s32 %s334, 1
    %s336 = scalar_select %p333, %s334, %s335
    %p339 = pneg %p333
    %p340 = scmp.eq.s32.totalorder %s20, 1
    %p341 = por %p339, %p340
    %p342 = scmp.ne.s32.totalorder %s334, %s337
    %p343 = scmp.eq.s32.totalorder %s20, 0
    %p344 = por %p342, %p343
    %p345 = scmp.ne.s32.totalorder %s334, %s337
    %p346 = scmp.eq.s32.totalorder %s25, 1
    %p347 = por %p345, %p346
    %p348 = scmp.ne.s32.totalorder %s337, %s338
    %p349 = scmp.eq.s32.totalorder %s25, 0
    %p350 = por %p348, %p349
    %p351 = scmp.ne.s32.totalorder %s337, %s338
    %p352 = scmp.eq.s32.totalorder %s26, 1
    %p353 = por %p351, %p352
    %p355 = scmp.ne.s32.totalorder %s338, %s354
    %p356 = scmp.eq.s32.totalorder %s26, 0
    %p357 = por %p355, %p356
    %p358 = scmp.le.s32.totalorder 1, %s20
    %p359 = scmp.lt.s32.totalorder %s20, 3
    %p360 = pnand %p358, %p359
    %p361 = pneg %p360
    // Predicated region
    $region9: #{qa_lang_model_forward.5} parent=5 // pred_check
      _
    $region10: #{qa_lang_model_forward.5} parent=5 // pred_check_branch
      %363 = sbr.rel (%p360) target = $region12
    $region11: #{qa_lang_model_forward.5} parent=5 // pred_region
      %s364 = ssub.s32 %s20, 1
      // Predicated region
      $region13: #{qa_lang_model_forward.5} parent=11 // pred_check
        %p365 = pneg %p93
      $region14: #{qa_lang_model_forward.5} parent=11 // pred_check_branch
        %367 = sbr.rel (%p365) target = $region16
      $region15: #{qa_lang_model_forward.5} parent=11 // pred_region
        _
      $region16: #{qa_lang_model_forward.5} parent=11 // pred_fallthru
        _
      // Predicated region
      $region17: #{qa_lang_model_forward.5} parent=11 // pred_check
        %p368 = pneg %p114
      $region18: #{qa_lang_model_forward.5} parent=11 // pred_check_branch
        %370 = sbr.rel (%p368) target = $region20
      $region19: #{qa_lang_model_forward.5} parent=11 // pred_region
        _
      $region20: #{qa_lang_model_forward.5} parent=11 // pred_fallthru
        _
      // Predicated region
      $region21: #{qa_lang_model_forward.5} parent=11 // pred_check
        %p371 = pneg %p135
      $region22: #{qa_lang_model_forward.5} parent=11 // pred_check_branch
        %373 = sbr.rel (%p371) target = $region24
      $region23: #{qa_lang_model_forward.5} parent=11 // pred_region
        _
      $region24: #{qa_lang_model_forward.5} parent=11 // pred_fallthru
        _
      // Predicated region
      $region25: #{qa_lang_model_forward.5} parent=11 // pred_check
        %p374 = pneg %p156
      $region26: #{qa_lang_model_forward.5} parent=11 // pred_check_branch
        %376 = sbr.rel (%p374) target = $region28
      $region27: #{qa_lang_model_forward.5} parent=11 // pred_region
        _
      $region28: #{qa_lang_model_forward.5} parent=11 // pred_fallthru
        _
      // Predicated region
      $region29: #{qa_lang_model_forward.5} parent=11 // pred_check
        %p377 = pneg %p177
      $region30: #{qa_lang_model_forward.5} parent=11 // pred_check_branch
        %379 = sbr.rel (%p377) target = $region32
      $region31: #{qa_lang_model_forward.5} parent=11 // pred_region
        _
      $region32: #{qa_lang_model_forward.5} parent=11 // pred_fallthru
        _
      // Predicated region
      $region33: #{qa_lang_model_forward.5} parent=11 // pred_check
        %p380 = pneg %p198
      $region34: #{qa_lang_model_forward.5} parent=11 // pred_check_branch
        %382 = sbr.rel (%p380) target = $region36
      $region35: #{qa_lang_model_forward.5} parent=11 // pred_region
        _
      $region36: #{qa_lang_model_forward.5} parent=11 // pred_fallthru
        _
      // Predicated region
      $region37: #{qa_lang_model_forward.5} parent=11 // pred_check
        %p383 = pneg %p219
      $region38: #{qa_lang_model_forward.5} parent=11 // pred_check_branch
        %385 = sbr.rel (%p383) target = $region40
      $region39: #{qa_lang_model_forward.5} parent=11 // pred_region
        _
      $region40: #{qa_lang_model_forward.5} parent=11 // pred_fallthru
        _
      // Predicated region
      $region41: #{qa_lang_model_forward.5} parent=11 // pred_check
        %p386 = pneg %p240
      $region42: #{qa_lang_model_forward.5} parent=11 // pred_check_branch
        %388 = sbr.rel (%p386) target = $region44
      $region43: #{qa_lang_model_forward.5} parent=11 // pred_region
        _
      $region44: #{qa_lang_model_forward.5} parent=11 // pred_fallthru
        _
      // Predicated region
      $region45: #{qa_lang_model_forward.5} parent=11 // pred_check
        %p389 = pneg %p261
      $region46: #{qa_lang_model_forward.5} parent=11 // pred_check_branch
        %391 = sbr.rel (%p389) target = $region48
      $region47: #{qa_lang_model_forward.5} parent=11 // pred_region
        _
      $region48: #{qa_lang_model_forward.5} parent=11 // pred_fallthru
        _
      // Predicated region
      $region49: #{qa_lang_model_forward.5} parent=11 // pred_check
        %p392 = pneg %p282
      $region50: #{qa_lang_model_forward.5} parent=11 // pred_check_branch
        %394 = sbr.rel (%p392) target = $region52
      $region51: #{qa_lang_model_forward.5} parent=11 // pred_region
        _
      $region52: #{qa_lang_model_forward.5} parent=11 // pred_fallthru
        _
      // Predicated region
      $region53: #{qa_lang_model_forward.5} parent=11 // pred_check
        %p395 = pneg %p303
      $region54: #{qa_lang_model_forward.5} parent=11 // pred_check_branch
        %397 = sbr.rel (%p395) target = $region56
      $region55: #{qa_lang_model_forward.5} parent=11 // pred_region
        _
      $region56: #{qa_lang_model_forward.5} parent=11 // pred_fallthru
        _
      // Predicated region
      $region57: #{qa_lang_model_forward.5} parent=11 // pred_check
        %p398 = pneg %p324
      $region58: #{qa_lang_model_forward.5} parent=11 // pred_check_branch
        %400 = sbr.rel (%p398) target = $region60
      $region59: #{qa_lang_model_forward.5} parent=11 // pred_region
        _
      $region60: #{qa_lang_model_forward.5} parent=11 // pred_fallthru
        _
    $region12: #{qa_lang_model_forward.5} parent=5 // pred_fallthru
      _
    %p401 = scmp.lt.s32.totalorder %s20, 2
    // Predicated region
    $region61: #{qa_lang_model_forward.5} parent=5 // pred_check
      %p402 = pneg %p401
    $region62: #{qa_lang_model_forward.5} parent=5 // pred_check_branch
      %404 = sbr.rel (%p402) target = $region64
    $region63: #{qa_lang_model_forward.5} parent=5 // pred_region
      // Predicated region
      $region65: #{qa_lang_model_forward.5} parent=63 // pred_check
        %p405 = pneg %p40
      $region66: #{qa_lang_model_forward.5} parent=63 // pred_check_branch
        %407 = sbr.rel (%p405) target = $region68
      $region67: #{qa_lang_model_forward.5} parent=63 // pred_region
        %p408 = scmp.lt.s32.totalorder %s20, 1
        %s409 = scalar_select %p408, %s20, 1
        %s410 = smul.addr %s409, 8
        %s411 = scalar_lea.vmem %s0, %s410
      $region68: #{qa_lang_model_forward.5} parent=63 // pred_fallthru
        _
      // Predicated region
      $region69: #{qa_lang_model_forward.5} parent=63 // pred_check
        %p412 = pneg %p66
      $region70: #{qa_lang_model_forward.5} parent=63 // pred_check_branch
        %414 = sbr.rel (%p412) target = $region72
      $region71: #{qa_lang_model_forward.5} parent=63 // pred_region
        %p415 = scmp.lt.s32.totalorder %s20, 1
        %s416 = scalar_select %p415, %s20, 1
        %s417 = scalar_lea.vmem %s1, %s416
      $region72: #{qa_lang_model_forward.5} parent=63 // pred_fallthru
        _
    $region64: #{qa_lang_model_forward.5} parent=5 // pred_fallthru
      _
    %p418 = scmp.le.s32.totalorder 1, %s20
    %p419 = scmp.lt.s32.totalorder %s20, 3
    %p420 = pnand %p418, %p419
    %p421 = pneg %p420
    // Predicated region
    $region73: #{qa_lang_model_forward.5} parent=5 // pred_check
      _
    $region74: #{qa_lang_model_forward.5} parent=5 // pred_check_branch
      %423 = sbr.rel (%p420) target = $region76
    $region75: #{qa_lang_model_forward.5} parent=5 // pred_region
      %s424 = ssub.s32 %s20, 1
      %p425 = scmp.lt.s32.totalorder %s25, 1
      %s426 = scalar_select %p425, %s25, 1
      %s427 = smul.addr %s426, 8
      %s428 = scalar_lea.vmem %s0, %s427
      %p429 = pneg %p46
      %p430 = pneg %p43
      %p431 = scmp.lt.s32.totalorder %s25, 1
      %s432 = scalar_select %p431, %s25, 1
      %s433 = scalar_lea.vmem %s1, %s432
      %p434 = pneg %p72
      %p435 = pneg %p69
      %p436 = pneg %p93
      %p437 = pneg %p90
      %p438 = pneg %p114
      %p439 = pneg %p111
      %p440 = pneg %p135
      %p441 = pneg %p132
      %p442 = pneg %p156
      %p443 = pneg %p153
      %p444 = pneg %p177
      %p445 = pneg %p174
      %p446 = pneg %p198
      %p447 = pneg %p195
      %p448 = pneg %p219
      %p449 = pneg %p216
      %p450 = pneg %p240
      %p451 = pneg %p237
      %p452 = pneg %p261
      %p453 = pneg %p258
      %p454 = pneg %p282
      %p455 = pneg %p279
      %p456 = pneg %p303
      %p457 = pneg %p300
      %p458 = pneg %p324
      %p459 = pneg %p321
      %p460 = pneg %p350
      %p461 = pneg %p347
      %p462 = scmp.lt.s32.totalorder %s25, 1
      %s463 = scalar_select %p462, %s25, 1
      %s464 = smul.addr %s463, 8
      %s465 = scalar_lea.vmem %s14, %s464
      %p466 = scmp.lt.s32.totalorder %s25, 1
      %s467 = scalar_select %p466, %s25, 1
      %s468 = smul.addr %s467, 8
      %s469 = scalar_lea.vmem %s0, %s468
      %p470 = scmp.lt.s32.totalorder %s25, 1
      %s471 = scalar_select %p470, %s25, 1
      %s472 = scalar_lea.vmem %s1, %s471
      %p473 = scmp.lt.s32.totalorder %s25, 1
      %s474 = scalar_select %p473, %s25, 1
      %s475 = smul.addr %s474, 8
      %s476 = scalar_lea.vmem %s14, %s475
      %v477 = vld [vmem:[%s469] sm:$0xff]
      %v478 = vld [vmem:[%s472] sm:$0x1]
      %v479 = vld [vmem:[%s2] sm:$0xff]
      %v480 = vld [vmem:[%s2 + $0x8] sm:$0xff]
      %v481 = vld [vmem:[%s2 + $0x10] sm:$0xff]
      %v482 = vld [vmem:[%s2 + $0x18] sm:$0xff]
      %v483 = vld [vmem:[%s3] sm:$0x1]
      %v485 = vlaneseq
      %v486 = vshrl.u32 %v485, 7
      %v487 = vsub.s32 0, %v486
      %v488 = vrot.slane %v483, %v487
      %vm490 = vcmask 261120
      %v492 = vsel %vm490, %v477, 0
      %494 = vmatprep.subr.mxu0 0.0
      %495 = vmatpush1.msra.mxu0 %v479
      %496 = vmatprep.subr.mxu0 0.0
      %497 = vmatpush1.msra.mxu0 %v480
      %498 = vmatprep.subr.mxu0 0.0
      %499 = vmatpush1.msra.mxu0 %v481
      %500 = vmatprep.subr.mxu0 0.0
      %501 = vmatpush1.msra.mxu0 %v482
      %502 = vmatprep.subr.mxu0 0.0
      %503 = vmatpush1.msra.mxu0 0.0
      %504 = vmatprep.subr.mxu0 0.0
      %505 = vmatpush1.msra.mxu0 0.0
      %506 = vmatprep.subr.mxu0 0.0
      %507 = vmatpush1.msra.mxu0 0.0
      %508 = vmatprep.subr.mxu0 0.0
      %509 = vmatpush1.msra.mxu0 0.0
      %510 = vmatprep.subr.mxu0 0.0
      %511 = vmatpush1.msra.mxu0 0.0
      %512 = vmatprep.subr.mxu0 0.0
      %513 = vmatpush1.msra.mxu0 0.0
      %514 = vmatprep.subr.mxu0 0.0
      %515 = vmatpush1.msra.mxu0 0.0
      %516 = vmatprep.subr.mxu0 0.0
      %517 = vmatpush1.msra.mxu0 0.0
      %518 = vmatprep.subr.mxu0 0.0
      %519 = vmatpush1.msra.mxu0 0.0
      %520 = vmatprep.subr.mxu0 0.0
      %521 = vmatpush1.msra.mxu0 0.0
      %522 = vmatprep.subr.mxu0 0.0
      %523 = vmatpush1.msra.mxu0 0.0
      %524 = vmatprep.subr.mxu0 0.0
      %525 = vmatpush1.msra.mxu0 0.0
      %526 = vmatprep.subr.mxu0 0.0
      %527 = vmatpush1.msra.mxu0 0.0
      %528 = vmatprep.subr.mxu0 0.0
      %529 = vmatpush1.msra.mxu0 0.0
      %530 = vmatprep.subr.mxu0 0.0
      %531 = vmatpush1.msra.mxu0 0.0
      %532 = vmatprep.subr.mxu0 0.0
      %533 = vmatpush1.msra.mxu0 0.0
      %534 = vmatprep.subr.mxu0 0.0
      %535 = vmatpush1.msra.mxu0 0.0
      %536 = vmatprep.subr.mxu0 0.0
      %537 = vmatpush1.msra.mxu0 0.0
      %538 = vmatprep.subr.mxu0 0.0
      %539 = vmatpush1.msra.mxu0 0.0
      %540 = vmatprep.subr.mxu0 0.0
      %541 = vmatpush1.msra.mxu0 0.0
      %542 = vmatprep.subr.mxu0 0.0
      %543 = vmatpush1.msra.mxu0 0.0
      %544 = vmatprep.subr.mxu0 0.0
      %545 = vmatpush1.msra.mxu0 0.0
      %546 = vmatprep.subr.mxu0 0.0
      %547 = vmatpush1.msra.mxu0 0.0
      %548 = vmatprep.subr.mxu0 0.0
      %549 = vmatpush1.msra.mxu0 0.0
      %550 = vmatprep.subr.mxu0 0.0
      %551 = vmatpush1.msra.mxu0 0.0
      %552 = vmatprep.subr.mxu0 0.0
      %553 = vmatpush1.msra.mxu0 0.0
      %554 = vmatprep.subr.mxu0 0.0
      %555 = vmatpush1.msra.mxu0 0.0
      %556 = vmatprep.subr.mxu0 0.0
      %557 = vmatpush1.msra.mxu0 0.0
      %558 = vmatprep.mubr.f32.mxu0 0.0
      %559 = vmatmul.mubr.f32.gmra.mrb[0].mxu0 %v492
      %v560 = vpop.f32.mrb[0].mxu0
      %v561 = vadd.f32 %v488, %v560
      %v562 = vpop.f32.mrb[0].mxu0
      %563 = vdwg.mxu0
      %565 = vrot.lane.b32.xlu0 %v561, 96
      %v566 = vpop.permute.xlu0 %565
      %vm567 = vcmask 130048
      %v568 = vsel %vm567, %v561, 0
      %v570 = vsel %vm567, %v566, 0
      %572 = vmatprep.subr.mxu0 0.0
      %573 = vmatpush1.xpose.msra.mxu0 %v570
      %574 = vmatprep.subr.mxu0 0.0
      %575 = vmatpush1.xpose.msra.mxu0 0.0
      %576 = vmatprep.subr.mxu0 0.0
      %577 = vmatpush1.xpose.msra.mxu0 0.0
      %578 = vmatprep.subr.mxu0 0.0
      %579 = vmatpush1.xpose.msra.mxu0 0.0
      %580 = vmatprep.subr.mxu0 0.0
      %581 = vmatpush1.xpose.msra.mxu0 0.0
      %582 = vmatprep.subr.mxu0 0.0
      %583 = vmatpush1.xpose.msra.mxu0 0.0
      %584 = vmatprep.subr.mxu0 0.0
      %585 = vmatpush1.xpose.msra.mxu0 0.0
      %586 = vmatprep.subr.mxu0 0.0
      %587 = vmatpush1.xpose.msra.mxu0 0.0
      %588 = vmatprep.subr.mxu0 0.0
      %589 = vmatpush1.xpose.msra.mxu0 0.0
      %590 = vmatprep.subr.mxu0 0.0
      %591 = vmatpush1.xpose.msra.mxu0 0.0
      %592 = vmatprep.subr.mxu0 0.0
      %593 = vmatpush1.xpose.msra.mxu0 0.0
      %594 = vmatprep.subr.mxu0 0.0
      %595 = vmatpush1.xpose.msra.mxu0 0.0
      %596 = vmatprep.subr.mxu0 0.0
      %597 = vmatpush1.xpose.msra.mxu0 0.0
      %598 = vmatprep.subr.mxu0 0.0
      %599 = vmatpush1.xpose.msra.mxu0 0.0
      %600 = vmatprep.subr.mxu0 0.0
      %601 = vmatpush1.xpose.msra.mxu0 0.0
      %602 = vmatprep.subr.mxu0 0.0
      %603 = vmatpush1.xpose.msra.mxu0 0.0
      %604 = vmatprep.subr.mxu0 0.0
      %605 = vmatpush1.xpose.msra.mxu0 0.0
      %606 = vmatprep.subr.mxu0 0.0
      %607 = vmatpush1.xpose.msra.mxu0 0.0
      %608 = vmatprep.subr.mxu0 0.0
      %609 = vmatpush1.xpose.msra.mxu0 0.0
      %610 = vmatprep.subr.mxu0 0.0
      %611 = vmatpush1.xpose.msra.mxu0 0.0
      %612 = vmatprep.subr.mxu0 0.0
      %613 = vmatpush1.xpose.msra.mxu0 0.0
      %614 = vmatprep.subr.mxu0 0.0
      %615 = vmatpush1.xpose.msra.mxu0 0.0
      %616 = vmatprep.subr.mxu0 0.0
      %617 = vmatpush1.xpose.msra.mxu0 0.0
      %618 = vmatprep.subr.mxu0 0.0
      %619 = vmatpush1.xpose.msra.mxu0 0.0
      %620 = vmatprep.subr.mxu0 0.0
      %621 = vmatpush1.xpose.msra.mxu0 0.0
      %622 = vmatprep.subr.mxu0 0.0
      %623 = vmatpush1.xpose.msra.mxu0 0.0
      %624 = vmatprep.subr.mxu0 0.0
      %625 = vmatpush1.xpose.msra.mxu0 0.0
      %626 = vmatprep.subr.mxu0 0.0
      %627 = vmatpush1.xpose.msra.mxu0 0.0
      %628 = vmatprep.subr.mxu0 0.0
      %629 = vmatpush1.xpose.msra.mxu0 0.0
      %630 = vmatprep.subr.mxu0 0.0
      %631 = vmatpush1.xpose.msra.mxu0 0.0
      %632 = vmatprep.subr.mxu0 0.0
      %633 = vmatpush1.xpose.msra.mxu0 0.0
      %634 = vmatprep.subr.mxu0 0.0
      %635 = vmatpush1.xpose.msra.mxu0 0.0
      %636 = vmatprep.mubr.f32.mxu0 0.0
      %637 = vmatmul.mubr.f32.gmra.mrb[0].mxu0 %v568
      %v638 = vpop.f32.mrb[0].mxu0
      %v639 = vadd.f32 0.0, %v638
      %v640 = vpop.f32.mrb[0].mxu0
      %641 = vdwg.mxu0
      %v642 = vmul.f32 %v639, 0.25
      %v644 = vlaneseq
      %v645 = vshrl.u32 %v644, 7
      %v646 = vsub.s32 0, %v645
      %v647 = vrot.slane %v478, %v646
      %v649 = vadd.f32 %v642, %v647
      %vm650 = vcmask 64512
      %v651 = vsel %vm650, %v649, -inf
      %652 = vmax.xlane.f32.xlu0 %v651
      %v653 = vpop.xlane.xlu0 %652
      %v654 = vsub.f32 %v649, %v653
      %v655 = vmul.f32 %v654, 1.442695
      %v656 = vpow.pop %v655
      %v657 = vsel %vm650, %v656, 0.0
      %658 = vadd.xlane.f32.xlu0 %v657
      %v659 = vpop.xlane.xlu0 %658
      %v660 = vrcp.pop %v659
      %v661 = vmul.f32 %v656, %v660
      %662 = vrot.lane.b32.xlu0 %v561, 64
      %v663 = vpop.permute.xlu0 %662
      %v666 = vsel %vm650, %v661, 0
      %668 = vmatprep.subr.mxu0 0.0
      %669 = vmatpush1.msra.mxu0 %v663
      %670 = vmatprep.subr.mxu0 0.0
      %671 = vmatpush1.msra.mxu0 0.0
      %672 = vmatprep.subr.mxu0 0.0
      %673 = vmatpush1.msra.mxu0 0.0
      %674 = vmatprep.subr.mxu0 0.0
      %675 = vmatpush1.msra.mxu0 0.0
      %676 = vmatprep.subr.mxu0 0.0
      %677 = vmatpush1.msra.mxu0 0.0
      %678 = vmatprep.subr.mxu0 0.0
      %679 = vmatpush1.msra.mxu0 0.0
      %680 = vmatprep.subr.mxu0 0.0
      %681 = vmatpush1.msra.mxu0 0.0
      %682 = vmatprep.subr.mxu0 0.0
      %683 = vmatpush1.msra.mxu0 0.0
      %684 = vmatprep.subr.mxu0 0.0
      %685 = vmatpush1.msra.mxu0 0.0
      %686 = vmatprep.subr.mxu0 0.0
      %687 = vmatpush1.msra.mxu0 0.0
      %688 = vmatprep.subr.mxu0 0.0
      %689 = vmatpush1.msra.mxu0 0.0
      %690 = vmatprep.subr.mxu0 0.0
      %691 = vmatpush1.msra.mxu0 0.0
      %692 = vmatprep.subr.mxu0 0.0
      %693 = vmatpush1.msra.mxu0 0.0
      %694 = vmatprep.subr.mxu0 0.0
      %695 = vmatpush1.msra.mxu0 0.0
      %696 = vmatprep.subr.mxu0 0.0
      %697 = vmatpush1.msra.mxu0 0.0
      %698 = vmatprep.subr.mxu0 0.0
      %699 = vmatpush1.msra.mxu0 0.0
      %700 = vmatprep.subr.mxu0 0.0
      %701 = vmatpush1.msra.mxu0 0.0
      %702 = vmatprep.subr.mxu0 0.0
      %703 = vmatpush1.msra.mxu0 0.0
      %704 = vmatprep.subr.mxu0 0.0
      %705 = vmatpush1.msra.mxu0 0.0
      %706 = vmatprep.subr.mxu0 0.0
      %707 = vmatpush1.msra.mxu0 0.0
      %708 = vmatprep.subr.mxu0 0.0
      %709 = vmatpush1.msra.mxu0 0.0
      %710 = vmatprep.subr.mxu0 0.0
      %711 = vmatpush1.msra.mxu0 0.0
      %712 = vmatprep.subr.mxu0 0.0
      %713 = vmatpush1.msra.mxu0 0.0
      %714 = vmatprep.subr.mxu0 0.0
      %715 = vmatpush1.msra.mxu0 0.0
      %716 = vmatprep.subr.mxu0 0.0
      %717 = vmatpush1.msra.mxu0 0.0
      %718 = vmatprep.subr.mxu0 0.0
      %719 = vmatpush1.msra.mxu0 0.0
      %720 = vmatprep.subr.mxu0 0.0
      %721 = vmatpush1.msra.mxu0 0.0
      %722 = vmatprep.subr.mxu0 0.0
      %723 = vmatpush1.msra.mxu0 0.0
      %724 = vmatprep.subr.mxu0 0.0
      %725 = vmatpush1.msra.mxu0 0.0
      %726 = vmatprep.subr.mxu0 0.0
      %727 = vmatpush1.msra.mxu0 0.0
      %728 = vmatprep.subr.mxu0 0.0
      %729 = vmatpush1.msra.mxu0 0.0
      %730 = vmatprep.subr.mxu0 0.0
      %731 = vmatpush1.msra.mxu0 0.0
      %732 = vmatprep.mubr.f32.mxu0 0.0
      %733 = vmatmul.mubr.f32.gmra.mrb[0].mxu0 %v666
      %v734 = vpop.f32.mrb[0].mxu0
      %v735 = vadd.f32 0.0, %v734
      %v736 = vpop.f32.mrb[0].mxu0
      %737 = vdwg.mxu0
      %v738 = vld [vmem:[%s4] sm:$0xff]
      %v739 = vld [vmem:[%s4 + $0x8] sm:$0xff]
      %740 = vrot.lane.b32.xlu0 %v561, 112
      %v741 = vpop.permute.xlu0 %740
      %742 = vrot.lane.b32.xlu0 %v561, 80
      %v743 = vpop.permute.xlu0 %742
      %v744 = vsel %vm567, %v741, 0
      %v746 = vsel %vm567, %v743, 0
      %748 = vmatprep.subr.mxu0 0.0
      %749 = vmatpush1.xpose.msra.mxu0 %v746
      %750 = vmatprep.subr.mxu0 0.0
      %751 = vmatpush1.xpose.msra.mxu0 0.0
      %752 = vmatprep.subr.mxu0 0.0
      %753 = vmatpush1.xpose.msra.mxu0 0.0
      %754 = vmatprep.subr.mxu0 0.0
      %755 = vmatpush1.xpose.msra.mxu0 0.0
      %756 = vmatprep.subr.mxu0 0.0
      %757 = vmatpush1.xpose.msra.mxu0 0.0
      %758 = vmatprep.subr.mxu0 0.0
      %759 = vmatpush1.xpose.msra.mxu0 0.0
      %760 = vmatprep.subr.mxu0 0.0
      %761 = vmatpush1.xpose.msra.mxu0 0.0
      %762 = vmatprep.subr.mxu0 0.0
      %763 = vmatpush1.xpose.msra.mxu0 0.0
      %764 = vmatprep.subr.mxu0 0.0
      %765 = vmatpush1.xpose.msra.mxu0 0.0
      %766 = vmatprep.subr.mxu0 0.0
      %767 = vmatpush1.xpose.msra.mxu0 0.0
      %768 = vmatprep.subr.mxu0 0.0
      %769 = vmatpush1.xpose.msra.mxu0 0.0
      %770 = vmatprep.subr.mxu0 0.0
      %771 = vmatpush1.xpose.msra.mxu0 0.0
      %772 = vmatprep.subr.mxu0 0.0
      %773 = vmatpush1.xpose.msra.mxu0 0.0
      %774 = vmatprep.subr.mxu0 0.0
      %775 = vmatpush1.xpose.msra.mxu0 0.0
      %776 = vmatprep.subr.mxu0 0.0
      %777 = vmatpush1.xpose.msra.mxu0 0.0
      %778 = vmatprep.subr.mxu0 0.0
      %779 = vmatpush1.xpose.msra.mxu0 0.0
      %780 = vmatprep.subr.mxu0 0.0
      %781 = vmatpush1.xpose.msra.mxu0 0.0
      %782 = vmatprep.subr.mxu0 0.0
      %783 = vmatpush1.xpose.msra.mxu0 0.0
      %784 = vmatprep.subr.mxu0 0.0
      %785 = vmatpush1.xpose.msra.mxu0 0.0
      %786 = vmatprep.subr.mxu0 0.0
      %787 = vmatpush1.xpose.msra.mxu0 0.0
      %788 = vmatprep.subr.mxu0 0.0
      %789 = vmatpush1.xpose.msra.mxu0 0.0
      %790 = vmatprep.subr.mxu0 0.0
      %791 = vmatpush1.xpose.msra.mxu0 0.0
      %792 = vmatprep.subr.mxu0 0.0
      %793 = vmatpush1.xpose.msra.mxu0 0.0
      %794 = vmatprep.subr.mxu0 0.0
      %795 = vmatpush1.xpose.msra.mxu0 0.0
      %796 = vmatprep.subr.mxu0 0.0
      %797 = vmatpush1.xpose.msra.mxu0 0.0
      %798 = vmatprep.subr.mxu0 0.0
      %799 = vmatpush1.xpose.msra.mxu0 0.0
      %800 = vmatprep.subr.mxu0 0.0
      %801 = vmatpush1.xpose.msra.mxu0 0.0
      %802 = vmatprep.subr.mxu0 0.0
      %803 = vmatpush1.xpose.msra.mxu0 0.0
      %804 = vmatprep.subr.mxu0 0.0
      %805 = vmatpush1.xpose.msra.mxu0 0.0
      %806 = vmatprep.subr.mxu0 0.0
      %807 = vmatpush1.xpose.msra.mxu0 0.0
      %808 = vmatprep.subr.mxu0 0.0
      %809 = vmatpush1.xpose.msra.mxu0 0.0
      %810 = vmatprep.subr.mxu0 0.0
      %811 = vmatpush1.xpose.msra.mxu0 0.0
      %812 = vmatprep.mubr.f32.mxu0 0.0
      %813 = vmatmul.mubr.f32.gmra.mrb[0].mxu0 %v744
      %v814 = vpop.f32.mrb[0].mxu0
      %v815 = vadd.f32 0.0, %v814
      %v816 = vpop.f32.mrb[0].mxu0
      %817 = vdwg.mxu0
      %v818 = vmul.f32 %v815, 0.25
      %v819 = vadd.f32 %v818, %v647
      %v820 = vsel %vm650, %v819, -inf
      %821 = vmax.xlane.f32.xlu0 %v820
      %v822 = vpop.xlane.xlu0 %821
      %v823 = vsub.f32 %v819, %v822
      %v824 = vmul.f32 %v823, 1.442695
      %v825 = vpow.pop %v824
      %v826 = vsel %vm650, %v825, 0.0
      %827 = vadd.xlane.f32.xlu0 %v826
      %v828 = vpop.xlane.xlu0 %827
      %v829 = vrcp.pop %v828
      %v830 = vmul.f32 %v825, %v829
      %831 = vrot.lane.b32.xlu0 %v561, 48
      %v832 = vpop.permute.xlu0 %831
      %v835 = vsel %vm650, %v830, 0
      %837 = vmatprep.subr.mxu0 0.0
      %838 = vmatpush1.msra.mxu0 %v832
      %839 = vmatprep.subr.mxu0 0.0
      %840 = vmatpush1.msra.mxu0 0.0
      %841 = vmatprep.subr.mxu0 0.0
      %842 = vmatpush1.msra.mxu0 0.0
      %843 = vmatprep.subr.mxu0 0.0
      %844 = vmatpush1.msra.mxu0 0.0
      %845 = vmatprep.subr.mxu0 0.0
      %846 = vmatpush1.msra.mxu0 0.0
      %847 = vmatprep.subr.mxu0 0.0
      %848 = vmatpush1.msra.mxu0 0.0
      %849 = vmatprep.subr.mxu0 0.0
      %850 = vmatpush1.msra.mxu0 0.0
      %851 = vmatprep.subr.mxu0 0.0
      %852 = vmatpush1.msra.mxu0 0.0
      %853 = vmatprep.subr.mxu0 0.0
      %854 = vmatpush1.msra.mxu0 0.0
      %855 = vmatprep.subr.mxu0 0.0
      %856 = vmatpush1.msra.mxu0 0.0
      %857 = vmatprep.subr.mxu0 0.0
      %858 = vmatpush1.msra.mxu0 0.0
      %859 = vmatprep.subr.mxu0 0.0
      %860 = vmatpush1.msra.mxu0 0.0
      %861 = vmatprep.subr.mxu0 0.0
      %862 = vmatpush1.msra.mxu0 0.0
      %863 = vmatprep.subr.mxu0 0.0
      %864 = vmatpush1.msra.mxu0 0.0
      %865 = vmatprep.subr.mxu0 0.0
      %866 = vmatpush1.msra.mxu0 0.0
      %867 = vmatprep.subr.mxu0 0.0
      %868 = vmatpush1.msra.mxu0 0.0
      %869 = vmatprep.subr.mxu0 0.0
      %870 = vmatpush1.msra.mxu0 0.0
      %871 = vmatprep.subr.mxu0 0.0
      %872 = vmatpush1.msra.mxu0 0.0
      %873 = vmatprep.subr.mxu0 0.0
      %874 = vmatpush1.msra.mxu0 0.0
      %875 = vmatprep.subr.mxu0 0.0
      %876 = vmatpush1.msra.mxu0 0.0
      %877 = vmatprep.subr.mxu0 0.0
      %878 = vmatpush1.msra.mxu0 0.0
      %879 = vmatprep.subr.mxu0 0.0
      %880 = vmatpush1.msra.mxu0 0.0
      %881 = vmatprep.subr.mxu0 0.0
      %882 = vmatpush1.msra.mxu0 0.0
      %883 = vmatprep.subr.mxu0 0.0
      %884 = vmatpush1.msra.mxu0 0.0
      %885 = vmatprep.subr.mxu0 0.0
      %886 = vmatpush1.msra.mxu0 0.0
      %887 = vmatprep.subr.mxu0 0.0
      %888 = vmatpush1.msra.mxu0 0.0
      %889 = vmatprep.subr.mxu0 0.0
      %890 = vmatpush1.msra.mxu0 0.0
      %891 = vmatprep.subr.mxu0 0.0
      %892 = vmatpush1.msra.mxu0 0.0
      %893 = vmatprep.subr.mxu0 0.0
      %894 = vmatpush1.msra.mxu0 0.0
      %895 = vmatprep.subr.mxu0 0.0
      %896 = vmatpush1.msra.mxu0 0.0
      %897 = vmatprep.subr.mxu0 0.0
      %898 = vmatpush1.msra.mxu0 0.0
      %899 = vmatprep.subr.mxu0 0.0
      %900 = vmatpush1.msra.mxu0 0.0
      %901 = vmatprep.mubr.f32.mxu0 0.0
      %902 = vmatmul.mubr.f32.gmra.mrb[0].mxu0 %v835
      %v903 = vpop.f32.mrb[0].mxu0
      %v904 = vadd.f32 0.0, %v903
      %v905 = vpop.f32.mrb[0].mxu0
      %906 = vdwg.mxu0
      %v907 = vld [vmem:[%s4 + $0x10] sm:$0xff]
      %v908 = vld [vmem:[%s4 + $0x18] sm:$0xff]
      %v910 = vsel %vm567, %v904, 0
      %912 = vmatprep.subr.mxu0 0.0
      %913 = vmatpush1.msra.mxu0 %v907
      %914 = vmatprep.subr.mxu0 0.0
      %915 = vmatpush1.msra.mxu0 %v908
      %916 = vmatprep.subr.mxu0 0.0
      %917 = vmatpush1.msra.mxu0 0.0
      %918 = vmatprep.subr.mxu0 0.0
      %919 = vmatpush1.msra.mxu0 0.0
      %920 = vmatprep.subr.mxu0 0.0
      %921 = vmatpush1.msra.mxu0 0.0
      %922 = vmatprep.subr.mxu0 0.0
      %923 = vmatpush1.msra.mxu0 0.0
      %924 = vmatprep.subr.mxu0 0.0
      %925 = vmatpush1.msra.mxu0 0.0
      %926 = vmatprep.subr.mxu0 0.0
      %927 = vmatpush1.msra.mxu0 0.0
      %928 = vmatprep.subr.mxu0 0.0
      %929 = vmatpush1.msra.mxu0 0.0
      %930 = vmatprep.subr.mxu0 0.0
      %931 = vmatpush1.msra.mxu0 0.0
      %932 = vmatprep.subr.mxu0 0.0
      %933 = vmatpush1.msra.mxu0 0.0
      %934 = vmatprep.subr.mxu0 0.0
      %935 = vmatpush1.msra.mxu0 0.0
      %936 = vmatprep.subr.mxu0 0.0
      %937 = vmatpush1.msra.mxu0 0.0
      %938 = vmatprep.subr.mxu0 0.0
      %939 = vmatpush1.msra.mxu0 0.0
      %940 = vmatprep.subr.mxu0 0.0
      %941 = vmatpush1.msra.mxu0 0.0
      %942 = vmatprep.subr.mxu0 0.0
      %943 = vmatpush1.msra.mxu0 0.0
      %944 = vmatprep.subr.mxu0 0.0
      %945 = vmatpush1.msra.mxu0 0.0
      %946 = vmatprep.subr.mxu0 0.0
      %947 = vmatpush1.msra.mxu0 0.0
      %948 = vmatprep.subr.mxu0 0.0
      %949 = vmatpush1.msra.mxu0 0.0
      %950 = vmatprep.subr.mxu0 0.0
      %951 = vmatpush1.msra.mxu0 0.0
      %952 = vmatprep.subr.mxu0 0.0
      %953 = vmatpush1.msra.mxu0 0.0
      %954 = vmatprep.subr.mxu0 0.0
      %955 = vmatpush1.msra.mxu0 0.0
      %956 = vmatprep.subr.mxu0 0.0
      %957 = vmatpush1.msra.mxu0 0.0
      %958 = vmatprep.subr.mxu0 0.0
      %959 = vmatpush1.msra.mxu0 0.0
      %960 = vmatprep.subr.mxu0 0.0
      %961 = vmatpush1.msra.mxu0 0.0
      %962 = vmatprep.subr.mxu0 0.0
      %963 = vmatpush1.msra.mxu0 0.0
      %964 = vmatprep.subr.mxu0 0.0
      %965 = vmatpush1.msra.mxu0 0.0
      %966 = vmatprep.subr.mxu0 0.0
      %967 = vmatpush1.msra.mxu0 0.0
      %968 = vmatprep.subr.mxu0 0.0
      %969 = vmatpush1.msra.mxu0 0.0
      %970 = vmatprep.subr.mxu0 0.0
      %971 = vmatpush1.msra.mxu0 0.0
      %972 = vmatprep.subr.mxu0 0.0
      %973 = vmatpush1.msra.mxu0 0.0
      %974 = vmatprep.subr.mxu0 0.0
      %975 = vmatpush1.msra.mxu0 0.0
      %976 = vmatprep.mubr.f32.mxu0 0.0
      %977 = vmatmul.mubr.f32.gmra.mrb[0].mxu0 %v910
      %v978 = vpop.f32.mrb[0].mxu0
      %v979 = vadd.f32 0.0, %v978
      %v980 = vpop.f32.mrb[0].mxu0
      %981 = vdwg.mxu0
      %v983 = vsel %vm567, %v735, 0
      %985 = vmatprep.subr.mxu0 0.0
      %986 = vmatpush1.msra.mxu0 %v738
      %987 = vmatprep.subr.mxu0 0.0
      %988 = vmatpush1.msra.mxu0 %v739
      %989 = vmatprep.subr.mxu0 0.0
      %990 = vmatpush1.msra.mxu0 0.0
      %991 = vmatprep.subr.mxu0 0.0
      %992 = vmatpush1.msra.mxu0 0.0
      %993 = vmatprep.subr.mxu0 0.0
      %994 = vmatpush1.msra.mxu0 0.0
      %995 = vmatprep.subr.mxu0 0.0
      %996 = vmatpush1.msra.mxu0 0.0
      %997 = vmatprep.subr.mxu0 0.0
      %998 = vmatpush1.msra.mxu0 0.0
      %999 = vmatprep.subr.mxu0 0.0
      %1000 = vmatpush1.msra.mxu0 0.0
      %1001 = vmatprep.subr.mxu0 0.0
      %1002 = vmatpush1.msra.mxu0 0.0
      %1003 = vmatprep.subr.mxu0 0.0
      %1004 = vmatpush1.msra.mxu0 0.0
      %1005 = vmatprep.subr.mxu0 0.0
      %1006 = vmatpush1.msra.mxu0 0.0
      %1007 = vmatprep.subr.mxu0 0.0
      %1008 = vmatpush1.msra.mxu0 0.0
      %1009 = vmatprep.subr.mxu0 0.0
      %1010 = vmatpush1.msra.mxu0 0.0
      %1011 = vmatprep.subr.mxu0 0.0
      %1012 = vmatpush1.msra.mxu0 0.0
      %1013 = vmatprep.subr.mxu0 0.0
      %1014 = vmatpush1.msra.mxu0 0.0
      %1015 = vmatprep.subr.mxu0 0.0
      %1016 = vmatpush1.msra.mxu0 0.0
      %1017 = vmatprep.subr.mxu0 0.0
      %1018 = vmatpush1.msra.mxu0 0.0
      %1019 = vmatprep.subr.mxu0 0.0
      %1020 = vmatpush1.msra.mxu0 0.0
      %1021 = vmatprep.subr.mxu0 0.0
      %1022 = vmatpush1.msra.mxu0 0.0
      %1023 = vmatprep.subr.mxu0 0.0
      %1024 = vmatpush1.msra.mxu0 0.0
      %1025 = vmatprep.subr.mxu0 0.0
      %1026 = vmatpush1.msra.mxu0 0.0
      %1027 = vmatprep.subr.mxu0 0.0
      %1028 = vmatpush1.msra.mxu0 0.0
      %1029 = vmatprep.subr.mxu0 0.0
      %1030 = vmatpush1.msra.mxu0 0.0
      %1031 = vmatprep.subr.mxu0 0.0
      %1032 = vmatpush1.msra.mxu0 0.0
      %1033 = vmatprep.subr.mxu0 0.0
      %1034 = vmatpush1.msra.mxu0 0.0
      %1035 = vmatprep.subr.mxu0 0.0
      %1036 = vmatpush1.msra.mxu0 0.0
      %1037 = vmatprep.subr.mxu0 0.0
      %1038 = vmatpush1.msra.mxu0 0.0
      %1039 = vmatprep.subr.mxu0 0.0
      %1040 = vmatpush1.msra.mxu0 0.0
      %1041 = vmatprep.subr.mxu0 0.0
      %1042 = vmatpush1.msra.mxu0 0.0
      %1043 = vmatprep.subr.mxu0 0.0
      %1044 = vmatpush1.msra.mxu0 0.0
      %1045 = vmatprep.subr.mxu0 0.0
      %1046 = vmatpush1.msra.mxu0 0.0
      %1047 = vmatprep.subr.mxu0 0.0
      %1048 = vmatpush1.msra.mxu0 0.0
      %1049 = vmatprep.mubr.f32.mxu0 0.0
      %1050 = vmatmul.mubr.f32.gmra.mrb[0].mxu0 %v983
      %v1051 = vpop.f32.mrb[0].mxu0
      %v1052 = vadd.f32 %v979, %v1051
      %v1053 = vpop.f32.mrb[0].mxu0
      %1054 = vdwg.mxu0
      %v1055 = vld [vmem:[%s5] sm:$0x1]
      %v1057 = vlaneseq
      %v1058 = vshrl.u32 %v1057, 7
      %v1059 = vsub.s32 0, %v1058
      %v1060 = vrot.slane %v1055, %v1059
      %v1062 = vadd.f32 %v1052, %v1060
      %v1063 = vadd.f32 %v477, %v1062
      %v1064 = vld [vmem:[%s6] sm:$0x1]
      %v1065 = vld [vmem:[%s7] sm:$0x1]
      %v1066 = vsel %vm490, %v1063, 0.0
      %1067 = vadd.xlane.f32.xlu0 %v1066
      %v1068 = vpop.xlane.xlu0 %1067
      %v1069 = vrcp.pop 32.0
      %v1070 = vmul.f32 %v1068, %v1069
      %v1071 = vsub.f32 %v1063, %v1070
      %v1072 = vmul.f32 %v1071, %v1071
      %v1073 = vsel %vm490, %v1072, 0.0
      %1074 = vadd.xlane.f32.xlu0 %v1073
      %v1075 = vpop.xlane.xlu0 %1074
      %v1076 = vmul.f32 %v1075, %v1069
      %v1077 = vadd.f32 %v1076, 1e-12
      %v1078 = vrsqrt.pop %v1077
      %v1079 = vmul.f32 %v1071, %v1078
      %v1081 = vlaneseq
      %v1082 = vshrl.u32 %v1081, 7
      %v1083 = vsub.s32 0, %v1082
      %v1084 = vrot.slane %v1064, %v1083
      %v1086 = vmul.f32 %v1079, %v1084
      %v1088 = vlaneseq
      %v1089 = vshrl.u32 %v1088, 7
      %v1090 = vsub.s32 0, %v1089
      %v1091 = vrot.slane %v1065, %v1090
      %v1093 = vadd.f32 %v1086, %v1091
      %v1094 = vld [vmem:[%s8] sm:$0xff]
      %v1095 = vld [vmem:[%s8 + $0x8] sm:$0xff]
      %v1096 = vld [vmem:[%s8 + $0x10] sm:$0xff]
      %v1097 = vld [vmem:[%s8 + $0x18] sm:$0xff]
      %v1098 = vld [vmem:[%s9] sm:$0x1]
      %v1100 = vlaneseq
      %v1101 = vshrl.u32 %v1100, 7
      %v1102 = vsub.s32 0, %v1101
      %v1103 = vrot.slane %v1098, %v1102
      %v1106 = vsel %vm490, %v1093, 0
      %1108 = vmatprep.subr.mxu0 0.0
      %1109 = vmatpush1.msra.mxu0 %v1094
      %1110 = vmatprep.subr.mxu0 0.0
      %1111 = vmatpush1.msra.mxu0 %v1095
      %1112 = vmatprep.subr.mxu0 0.0
      %1113 = vmatpush1.msra.mxu0 %v1096
      %1114 = vmatprep.subr.mxu0 0.0
      %1115 = vmatpush1.msra.mxu0 %v1097
      %1116 = vmatprep.subr.mxu0 0.0
      %1117 = vmatpush1.msra.mxu0 0.0
      %1118 = vmatprep.subr.mxu0 0.0
      %1119 = vmatpush1.msra.mxu0 0.0
      %1120 = vmatprep.subr.mxu0 0.0
      %1121 = vmatpush1.msra.mxu0 0.0
      %1122 = vmatprep.subr.mxu0 0.0
      %1123 = vmatpush1.msra.mxu0 0.0
      %1124 = vmatprep.subr.mxu0 0.0
      %1125 = vmatpush1.msra.mxu0 0.0
      %1126 = vmatprep.subr.mxu0 0.0
      %1127 = vmatpush1.msra.mxu0 0.0
      %1128 = vmatprep.subr.mxu0 0.0
      %1129 = vmatpush1.msra.mxu0 0.0
      %1130 = vmatprep.subr.mxu0 0.0
      %1131 = vmatpush1.msra.mxu0 0.0
      %1132 = vmatprep.subr.mxu0 0.0
      %1133 = vmatpush1.msra.mxu0 0.0
      %1134 = vmatprep.subr.mxu0 0.0
      %1135 = vmatpush1.msra.mxu0 0.0
      %1136 = vmatprep.subr.mxu0 0.0
      %1137 = vmatpush1.msra.mxu0 0.0
      %1138 = vmatprep.subr.mxu0 0.0
      %1139 = vmatpush1.msra.mxu0 0.0
      %1140 = vmatprep.subr.mxu0 0.0
      %1141 = vmatpush1.msra.mxu0 0.0
      %1142 = vmatprep.subr.mxu0 0.0
      %1143 = vmatpush1.msra.mxu0 0.0
      %1144 = vmatprep.subr.mxu0 0.0
      %1145 = vmatpush1.msra.mxu0 0.0
      %1146 = vmatprep.subr.mxu0 0.0
      %1147 = vmatpush1.msra.mxu0 0.0
      %1148 = vmatprep.subr.mxu0 0.0
      %1149 = vmatpush1.msra.mxu0 0.0
      %1150 = vmatprep.subr.mxu0 0.0
      %1151 = vmatpush1.msra.mxu0 0.0
      %1152 = vmatprep.subr.mxu0 0.0
      %1153 = vmatpush1.msra.mxu0 0.0
      %1154 = vmatprep.subr.mxu0 0.0
      %1155 = vmatpush1.msra.mxu0 0.0
      %1156 = vmatprep.subr.mxu0 0.0
      %1157 = vmatpush1.msra.mxu0 0.0
      %1158 = vmatprep.subr.mxu0 0.0
      %1159 = vmatpush1.msra.mxu0 0.0
      %1160 = vmatprep.subr.mxu0 0.0
      %1161 = vmatpush1.msra.mxu0 0.0
      %1162 = vmatprep.subr.mxu0 0.0
      %1163 = vmatpush1.msra.mxu0 0.0
      %1164 = vmatprep.subr.mxu0 0.0
      %1165 = vmatpush1.msra.mxu0 0.0
      %1166 = vmatprep.subr.mxu0 0.0
      %1167 = vmatpush1.msra.mxu0 0.0
      %1168 = vmatprep.subr.mxu0 0.0
      %1169 = vmatpush1.msra.mxu0 0.0
      %1170 = vmatprep.subr.mxu0 0.0
      %1171 = vmatpush1.msra.mxu0 0.0
      %1172 = vmatprep.mubr.f32.mxu0 0.0
      %1173 = vmatmul.mubr.f32.gmra.mrb[0].mxu0 %v1106
      %v1174 = vpop.f32.mrb[0].mxu0
      %v1175 = vadd.f32 %v1103, %v1174
      %v1176 = vpop.f32.mrb[0].mxu0
      %1177 = vdwg.mxu0
      %v1178 = vmul.f32 %v1175, 0.5
      %v1179 = vmul.f32 %v1175, 0.044715
      %v1180 = vmul.f32 %v1179, %v1175
      %v1181 = vmul.f32 %v1180, %v1175
      %v1182 = vadd.f32 %v1175, %v1181
      %v1183 = vmul.f32 %v1182, 0.7978846
      %v1184 = vtanh.pop %v1183
      %v1185 = vadd.f32 %v1184, 1.0
      %v1186 = vmul.f32 %v1178, %v1185
      %v1187 = vld [vmem:[%s10] sm:$0xff]
      %v1188 = vld [vmem:[%s10 + $0x8] sm:$0xff]
      %v1189 = vld [vmem:[%s10 + $0x10] sm:$0xff]
      %v1190 = vld [vmem:[%s10 + $0x18] sm:$0xff]
      %v1191 = vld [vmem:[%s10 + $0x20] sm:$0xff]
      %v1192 = vld [vmem:[%s10 + $0x28] sm:$0xff]
      %v1193 = vld [vmem:[%s10 + $0x30] sm:$0xff]
      %v1194 = vld [vmem:[%s10 + $0x38] sm:$0xff]
      %v1195 = vld [vmem:[%s10 + $0x40] sm:$0xff]
      %v1196 = vld [vmem:[%s10 + $0x48] sm:$0xff]
      %v1197 = vld [vmem:[%s10 + $0x50] sm:$0xff]
      %v1198 = vld [vmem:[%s10 + $0x58] sm:$0xff]
      %v1199 = vld [vmem:[%s10 + $0x60] sm:$0xff]
      %v1200 = vld [vmem:[%s10 + $0x68] sm:$0xff]
      %v1201 = vld [vmem:[%s10 + $0x70] sm:$0xff]
      %v1202 = vld [vmem:[%s10 + $0x78] sm:$0xff]
      %v1203 = vld [vmem:[%s11] sm:$0x1]
      %v1205 = vlaneseq
      %v1206 = vshrl.u32 %v1205, 7
      %v1207 = vsub.s32 0, %v1206
      %v1208 = vrot.slane %v1203, %v1207
      %1210 = vmatprep.subr.mxu0 0.0
      %1211 = vmatpush1.msra.mxu0 %v1187
      %1212 = vmatprep.subr.mxu0 0.0
      %1213 = vmatpush1.msra.mxu0 %v1188
      %1214 = vmatprep.subr.mxu0 0.0
      %1215 = vmatpush1.msra.mxu0 %v1189
      %1216 = vmatprep.subr.mxu0 0.0
      %1217 = vmatpush1.msra.mxu0 %v1190
      %1218 = vmatprep.subr.mxu0 0.0
      %1219 = vmatpush1.msra.mxu0 %v1191
      %1220 = vmatprep.subr.mxu0 0.0
      %1221 = vmatpush1.msra.mxu0 %v1192
      %1222 = vmatprep.subr.mxu0 0.0
      %1223 = vmatpush1.msra.mxu0 %v1193
      %1224 = vmatprep.subr.mxu0 0.0
      %1225 = vmatpush1.msra.mxu0 %v1194
      %1226 = vmatprep.subr.mxu0 0.0
      %1227 = vmatpush1.msra.mxu0 %v1195
      %1228 = vmatprep.subr.mxu0 0.0
      %1229 = vmatpush1.msra.mxu0 %v1196
      %1230 = vmatprep.subr.mxu0 0.0
      %1231 = vmatpush1.msra.mxu0 %v1197
      %1232 = vmatprep.subr.mxu0 0.0
      %1233 = vmatpush1.msra.mxu0 %v1198
      %1234 = vmatprep.subr.mxu0 0.0
      %1235 = vmatpush1.msra.mxu0 %v1199
      %1236 = vmatprep.subr.mxu0 0.0
      %1237 = vmatpush1.msra.mxu0 %v1200
      %1238 = vmatprep.subr.mxu0 0.0
      %1239 = vmatpush1.msra.mxu0 %v1201
      %1240 = vmatprep.subr.mxu0 0.0
      %1241 = vmatpush1.msra.mxu0 %v1202
      %1242 = vmatprep.subr.mxu0 0.0
      %1243 = vmatpush1.msra.mxu0 0.0
      %1244 = vmatprep.subr.mxu0 0.0
      %1245 = vmatpush1.msra.mxu0 0.0
      %1246 = vmatprep.subr.mxu0 0.0
      %1247 = vmatpush1.msra.mxu0 0.0
      %1248 = vmatprep.subr.mxu0 0.0
      %1249 = vmatpush1.msra.mxu0 0.0
      %1250 = vmatprep.subr.mxu0 0.0
      %1251 = vmatpush1.msra.mxu0 0.0
      %1252 = vmatprep.subr.mxu0 0.0
      %1253 = vmatpush1.msra.mxu0 0.0
      %1254 = vmatprep.subr.mxu0 0.0
      %1255 = vmatpush1.msra.mxu0 0.0
      %1256 = vmatprep.subr.mxu0 0.0
      %1257 = vmatpush1.msra.mxu0 0.0
      %1258 = vmatprep.subr.mxu0 0.0
      %1259 = vmatpush1.msra.mxu0 0.0
      %1260 = vmatprep.subr.mxu0 0.0
      %1261 = vmatpush1.msra.mxu0 0.0
      %1262 = vmatprep.subr.mxu0 0.0
      %1263 = vmatpush1.msra.mxu0 0.0
      %1264 = vmatprep.subr.mxu0 0.0
      %1265 = vmatpush1.msra.mxu0 0.0
      %1266 = vmatprep.subr.mxu0 0.0
      %1267 = vmatpush1.msra.mxu0 0.0
      %1268 = vmatprep.subr.mxu0 0.0
      %1269 = vmatpush1.msra.mxu0 0.0
      %1270 = vmatprep.subr.mxu0 0.0
      %1271 = vmatpush1.msra.mxu0 0.0
      %1272 = vmatprep.subr.mxu0 0.0
      %1273 = vmatpush1.msra.mxu0 0.0
      %1274 = vmatprep.mubr.f32.mxu0 0.0
      %1275 = vmatmul.mubr.f32.gmra.mrb[0].mxu0 %v1186
      %v1276 = vpop.f32.mrb[0].mxu0
      %v1277 = vadd.f32 %v1208, %v1276
      %v1278 = vpop.f32.mrb[0].mxu0
      %1279 = vdwg.mxu0
      %v1280 = vadd.f32 %v1093, %v1277
      %v1281 = vld [vmem:[%s12] sm:$0x1]
      %v1282 = vld [vmem:[%s13] sm:$0x1]
      %v1283 = vsel %vm490, %v1280, 0.0
      %1284 = vadd.xlane.f32.xlu0 %v1283
      %v1285 = vpop.xlane.xlu0 %1284
      %v1286 = vmul.f32 %v1285, %v1069
      %v1287 = vsub.f32 %v1280, %v1286
      %v1288 = vmul.f32 %v1287, %v1287
      %v1289 = vsel %vm490, %v1288, 0.0
      %1290 = vadd.xlane.f32.xlu0 %v1289
      %v1291 = vpop.xlane.xlu0 %1290
      %v1292 = vmul.f32 %v1291, %v1069
      %v1293 = vadd.f32 %v1292, 1e-12
      %v1294 = vrsqrt.pop %v1293
      %v1295 = vmul.f32 %v1287, %v1294
      %v1297 = vlaneseq
      %v1298 = vshrl.u32 %v1297, 7
      %v1299 = vsub.s32 0, %v1298
      %v1300 = vrot.slane %v1281, %v1299
      %v1302 = vmul.f32 %v1295, %v1300
      %v1304 = vlaneseq
      %v1305 = vshrl.u32 %v1304, 7
      %v1306 = vsub.s32 0, %v1305
      %v1307 = vrot.slane %v1282, %v1306
      %v1309 = vadd.f32 %v1302, %v1307
      %1310 = vst.msk [vmem:[%s476] sm:$0xff] %vm490, %v1309
      %p1311 = scmp.lt.s32.totalorder %s25, 1
      %s1312 = scalar_select %p1311, %s25, 1
      %s1313 = smul.addr %s1312, 8
      %s1314 = scalar_lea.vmem %s14, %s1313
      // Predicated region
      $region77: #{qa_lang_model_forward.5} parent=75 // pred_check
        %p1315 = pneg %p347
      $region78: #{qa_lang_model_forward.5} parent=75 // pred_check_branch
        %1317 = sbr.rel (%p1315) target = $region80
      $region79: #{qa_lang_model_forward.5} parent=75 // pred_region
        _
      $region80: #{qa_lang_model_forward.5} parent=75 // pred_fallthru
        _
    $region76: #{qa_lang_model_forward.5} parent=5 // pred_fallthru
      _
    %p1318 = scmp.le.s32.totalorder 2, %s20
    // Predicated region
    $region81: #{qa_lang_model_forward.5} parent=5 // pred_check
      %p1319 = pneg %p1318
    $region82: #{qa_lang_model_forward.5} parent=5 // pred_check_branch
      %1321 = sbr.rel (%p1319) target = $region84
    $region83: #{qa_lang_model_forward.5} parent=5 // pred_region
      %s1322 = ssub.s32 %s20, 2
      // Predicated region
      $region85: #{qa_lang_model_forward.5} parent=83 // pred_check
        %p1323 = pneg %p353
      $region86: #{qa_lang_model_forward.5} parent=83 // pred_check_branch
        %1325 = sbr.rel (%p1323) target = $region88
      $region87: #{qa_lang_model_forward.5} parent=83 // pred_region
        %p1326 = scmp.lt.s32.totalorder %s26, 1
        %s1327 = scalar_select %p1326, %s26, 1
        %s1328 = smul.addr %s1327, 8
        %s1329 = scalar_lea.vmem %s14, %s1328
      $region88: #{qa_lang_model_forward.5} parent=83 // pred_fallthru
        _
    $region84: #{qa_lang_model_forward.5} parent=5 // pred_fallthru
      _
  $region6: #{qa_lang_model_forward.5} parent=0 // loop_footer
    %s24 = sadd.s32 1, %s20
  $region7: #{qa_lang_model_forward.5} parent=0 // loop_footer_branch
    %19 = sbr.rel target = $region3
  $region8: #{qa_lang_model_forward.5} parent=0 // loop_exit
    _

</llo_original>
